<compile_context>
chip_gen: v7x
topology: tpu7x:2x2x1
jax: 0.10.0
libtpu: 0.0.40
codegen_flags: <defaults>
</compile_context>

<pallas_src>
import functools
import math

import jax
import jax.numpy as jnp
import numpy as np
from jax.experimental import pallas as pl
from jax.experimental.pallas import tpu as pltpu


# ----------------------------------------------------------------------------
# Pallas kernel: one encoder layer for one batch tile; grid = (batch_tile, layer).
# The x output block (index depends only on the batch tile) stays resident
# across the layer axis and acts as the carry between layers.
# ----------------------------------------------------------------------------
def _encoder_stack_kernel(
    x_ref,                        # (BT, S, H)  f32   original input (layer 0 only)
    vecs_ref,                     # (1, 9, H)   f32   packed per-layer vectors
    b1_ref,                       # (1, 1, M)   f32
    wq_ref, wk_ref, wv_ref,       # (1, H, H)   bf16  (pre-transposed, wq pre-scaled)
    wo_ref,                       # (1, H, H)   bf16
    w1_ref,                       # (1, H, M)   bf16
    w2_ref,                       # (1, M, H)   bf16
    x_out_ref,                    # (BT, S, H)  f32   carry across layer axis
    *opt_refs,                    # (attn_out_ref,) iff need_weights: (1, BT, S, S) f32
    num_heads: int,
    need_weights: bool,
):
    layer = pl.program_id(1)

    # Layer 0: seed the carry. The x output block is resident in VMEM for the
    # whole layer loop of this batch tile.
    @pl.when(layer == 0)
    def _():
        x_out_ref[...] = x_ref[...]

    BT, S, H = x_out_ref.shape
    dh = H // num_heads
    inv_sqrt2 = 1.0 / math.sqrt(2.0)

    # Packed per-layer vectors:
    # 0 ln1_g, 1 ln1_b, 2 bq(scaled), 3 bk, 4 bv, 5 out_b, 6 ln2_g, 7 ln2_b, 8 b2
    vecs = vecs_ref[0]                               # (9, H) f32

    x = x_out_ref[...].reshape(BT * S, H).astype(jnp.float32)   # (BT*S, H)

    def layernorm(v, g, b):                          # f32 math (v5e: no bf16 VPU)
        mu = jnp.mean(v, axis=-1, keepdims=True)
        var = jnp.mean((v - mu) ** 2, axis=-1, keepdims=True)
        return (v - mu) * jax.lax.rsqrt(var + 1e-5) * g + b

    def bdot(a_f32, w_bf16):                         # bf16 MXU feed, f32 accumulate
        return jnp.dot(a_f32.astype(jnp.bfloat16), w_bf16,
                       preferred_element_type=jnp.float32)

    # ---- self attention (pre-norm) ----
    nx = layernorm(x, vecs[0:1], vecs[1:2])
    q = bdot(nx, wq_ref[0]) + vecs[2:3]              # (BT*S, H), 1/sqrt(dh) folded in
    k = bdot(nx, wk_ref[0]) + vecs[3:4]
    v = bdot(nx, wv_ref[0]) + vecs[4:5]

    q3 = q.reshape(BT, S, H).astype(jnp.bfloat16)    # S == 8 sublanes -> aligned split
    k3 = k.reshape(BT, S, H).astype(jnp.bfloat16)
    v3 = v.reshape(BT, S, H).astype(jnp.bfloat16)

    attn_acc = jnp.zeros((BT * S, H), jnp.float32)   # lane-dense accumulator
    if need_weights:
        w_sum = jnp.zeros((BT, S, S), jnp.float32)

    for h in range(num_heads):                       # static, small head count
        sl = slice(h * dh, (h + 1) * dh)
        # scores batched over the batch tile: (BT, S, S)
        s = jnp.einsum("bqd,bkd->bqk", q3[..., sl], k3[..., sl],
                       preferred_element_type=jnp.float32)
        s = s - jnp.max(s, axis=-1, keepdims=True)
        p = jnp.exp(s)
        p = p * pl.reciprocal(jnp.sum(p, axis=-1, keepdims=True), approx=True)
        if need_weights:
            w_sum = w_sum + p
        ctx = jnp.einsum("bqk,bkd->bqd", p.astype(jnp.bfloat16), v3[..., sl],
                         preferred_element_type=jnp.float32)       # (BT, S, dh)
        # fold the out-projection per head: no ctx concatenate / lane shuffles
        attn_acc = attn_acc + jnp.dot(
            ctx.reshape(BT * S, dh).astype(jnp.bfloat16),
            wo_ref[0, sl, :], preferred_element_type=jnp.float32)

    if need_weights:
        attn_out_ref = opt_refs[0]
        attn_out_ref[0] = (w_sum * (1.0 / num_heads)).astype(attn_out_ref.dtype)

    x = x + attn_acc + vecs[5:6]                     # residual 1 (+ out bias)

    # ---- MLP (pre-norm); dropout is identity in eval mode ----
    nx2 = layernorm(x, vecs[6:7], vecs[7:8])
    h1 = bdot(nx2, w1_ref[0]) + b1_ref[0]
    g = 0.5 * h1 * (1.0 + jax.lax.erf(h1 * inv_sqrt2))   # exact GELU, f32
    mlp = bdot(g, w2_ref[0]) + vecs[8:9]

    x_out_ref[...] = (x + mlp).reshape(BT, S, H).astype(x_out_ref.dtype)   # carry


# ----------------------------------------------------------------------------
# One-time host-side packing (model-build time, NOT per forward call):
# transpose + bf16-cast weights, split in_proj into q/k/v, fold 1/sqrt(dh)
# into wq/bq, pack all H-sized vectors into one (L, 9, H) array.
# ----------------------------------------------------------------------------
def pack_params(params, *, num_heads):
    L = len(params)
    H = params[0]["out_w"].shape[0]
    M = params[0]["w1"].shape[0]
    dh = H // num_heads
    scale = 1.0 / math.sqrt(dh)

    def stack_bf16(fn):
        return jnp.stack([fn(p) for p in params]).astype(jnp.bfloat16)

    wq = stack_bf16(lambda p: (p["in_w"][:H].astype(jnp.float32) * scale).T)
    wk = stack_bf16(lambda p: p["in_w"][H:2 * H].T)
    wv = stack_bf16(lambda p: p["in_w"][2 * H:].T)
    wo = stack_bf16(lambda p: p["out_w"].T)          # (L, H, H)
    w1 = stack_bf16(lambda p: p["w1"].T)             # (L, H, M)
    w2 = stack_bf16(lambda p: p["w2"].T)             # (L, M, H)

    def layer_vecs(p):
        in_b = p["in_b"].reshape(-1).astype(jnp.float32)
        return jnp.stack([
            p["ln1_g"].reshape(-1), p["ln1_b"].reshape(-1),
            in_b[:H] * scale, in_b[H:2 * H], in_b[2 * H:],
            p["out_b"].reshape(-1),
            p["ln2_g"].reshape(-1), p["ln2_b"].reshape(-1),
            p["b2"].reshape(-1),
        ])

    vecs = jnp.stack([layer_vecs(p) for p in params]).astype(jnp.float32)   # (L, 9, H)
    b1 = jnp.stack([p["b1"].reshape(1, -1) for p in params]).astype(jnp.float32)  # (L,1,M)

    return dict(wq=wq, wk=wk, wv=wv, wo=wo, w1=w1, w2=w2, vecs=vecs, b1=b1,
                num_layers=L, hidden=H, mlp=M)


# ----------------------------------------------------------------------------
# Wrapper: one pallas_call for the whole stack, grid over (batch_tile, layer).
# ----------------------------------------------------------------------------
def encoder_stack(x_sbh, packed, *, num_heads, need_weights=True, b_tile=None):
    """x_sbh: (seq, batch, hidden) — PyTorch MultiheadAttention default layout."""
    x = jnp.transpose(x_sbh, (1, 0, 2))               # (B, S, H)
    B, S, H = x.shape
    L = packed["num_layers"]

    if b_tile is None:
        b_tile = B          # fold whole batch -> weights DMA'd once per layer
    assert B % b_tile == 0
    n_bt = B // b_tile      # keep >= 2 (and "parallel") on v7x to use both TCs

    def wspec(arr):         # full per-layer block, indexed by layer only
        return pl.BlockSpec((1,) + arr.shape[1:], lambda bt, l: (l, 0, 0))

    x_spec = pl.BlockSpec((b_tile, S, H), lambda bt, l: (bt, 0, 0))

    in_specs = [
        x_spec,
        wspec(packed["vecs"]), wspec(packed["b1"]),
        wspec(packed["wq"]), wspec(packed["wk"]), wspec(packed["wv"]),
        wspec(packed["wo"]), wspec(packed["w1"]), wspec(packed["w2"]),
    ]
    out_shape = [jax.ShapeDtypeStruct((B, S, H), x.dtype)]
    out_specs = [x_spec]                               # carry: index depends on bt only
    if need_weights:
        out_shape.append(jax.ShapeDtypeStruct((L, B, S, S), jnp.float32))
        out_specs.append(pl.BlockSpec((1, b_tile, S, S), lambda bt, l: (l, bt, 0, 0)))

    kernel = functools.partial(_encoder_stack_kernel,
                               num_heads=num_heads, need_weights=need_weights)

    result = pl.pallas_call(
        kernel,
        out_shape=out_shape,
        grid_spec=pltpu.PrefetchScalarGridSpec(
            num_scalar_prefetch=0,
            grid=(n_bt, L),                            # layer (carry) axis LAST
            in_specs=in_specs,
            out_specs=out_specs,
        ),
        compiler_params=pltpu.CompilerParams(
            dimension_semantics=("parallel", "arbitrary"),
            # tiny at these shapes; stays within v7x's 64 MiB physical VMEM.
            vmem_limit_bytes=32 * 1024 * 1024,
        ),
    )(x, packed["vecs"], packed["b1"], packed["wq"], packed["wk"],
      packed["wv"], packed["wo"], packed["w1"], packed["w2"])

    x_out = result[0]
    attn_ws = [result[1][l] for l in range(L)] if need_weights else None
    return jnp.transpose(x_out, (1, 0, 2)), attn_ws


# ----------------------------------------------------------------------------
# Pure-JAX reference mirroring the kernel numerics (bf16 matmul operands with
# the same host-side scale folding, f32 accumulation, exact softmax division).
# ----------------------------------------------------------------------------
def _reference(x_sbh, params, *, num_heads):
    x = jnp.transpose(x_sbh, (1, 0, 2)).astype(jnp.float32)  # (B, S, H)
    B, S, H = x.shape
    dh = H // num_heads
    scale = 1.0 / math.sqrt(dh)
    inv_sqrt2 = 1.0 / math.sqrt(2.0)
    attn_ws = []

    def ln(v, g, b):
        mu = jnp.mean(v, axis=-1, keepdims=True)
        var = jnp.mean((v - mu) ** 2, axis=-1, keepdims=True)
        return (v - mu) * jax.lax.rsqrt(var + 1e-5) * g + b

    def bdot(a, w):
        return jnp.dot(a.astype(jnp.bfloat16), w.astype(jnp.bfloat16),
                       preferred_element_type=jnp.float32)

    for p in params:
        nx = ln(x, p["ln1_g"][0], p["ln1_b"][0])
        in_b = p["in_b"][0]
        q = bdot(nx, (p["in_w"][:H] * scale).T) + in_b[:H] * scale
        k = bdot(nx, p["in_w"][H:2 * H].T) + in_b[H:2 * H]
        v = bdot(nx, p["in_w"][2 * H:].T) + in_b[2 * H:]

        def heads(t):
            return (t.astype(jnp.bfloat16)
                    .reshape(B, S, num_heads, dh).transpose(0, 2, 1, 3))
        qh, kh, vh = heads(q), heads(k), heads(v)
        s = jnp.einsum("bhqd,bhkd->bhqk", qh, kh,
                       preferred_element_type=jnp.float32)
        s = s - jnp.max(s, axis=-1, keepdims=True)
        pw = jnp.exp(s)
        pw = pw / jnp.sum(pw, axis=-1, keepdims=True)
        ctx = jnp.einsum("bhqk,bhkd->bhqd", pw.astype(jnp.bfloat16), vh,
                         preferred_element_type=jnp.float32)
        ctx = ctx.transpose(0, 2, 1, 3).reshape(B, S, H)
        attn = bdot(ctx, p["out_w"].T) + p["out_b"][0]
        x = x + attn
        attn_ws.append(pw.mean(axis=1))               # (B, S, S)

        nx2 = ln(x, p["ln2_g"][0], p["ln2_b"][0])
        h1 = bdot(nx2, p["w1"].T) + p["b1"][0]
        g = 0.5 * h1 * (1.0 + jax.lax.erf(h1 * inv_sqrt2))
        x = x + bdot(g, p["w2"].T) + p["b2"][0]

    return jnp.transpose(x, (1, 0, 2)), attn_ws


# ----------------------------------------------------------------------------
# Deterministic parameter init + main.
# ----------------------------------------------------------------------------
def init_params(key, num_layers, H, M):
    params = []
    for _ in range(num_layers):
        ks = jax.random.split(key, 9)
        key = ks[0]
        p = {
            "ln1_g": 1.0 + 0.05 * jax.random.normal(ks[1], (1, H), jnp.float32),
            "ln1_b": 0.02 * jax.random.normal(ks[2], (1, H), jnp.float32),
            "in_w": 0.05 * jax.random.normal(ks[3], (3 * H, H), jnp.float32),
            "in_b": 0.02 * jax.random.normal(ks[4], (1, 3 * H), jnp.float32),
            "out_w": 0.05 * jax.random.normal(ks[5], (H, H), jnp.float32),
            "out_b": 0.02 * jax.random.normal(ks[6], (1, H), jnp.float32),
            "ln2_g": 1.0 + 0.05 * jax.random.normal(ks[7], (1, H), jnp.float32),
            "ln2_b": 0.02 * jax.random.normal(ks[8], (1, H), jnp.float32),
        }
        ks2 = jax.random.split(key, 5)
        key = ks2[0]
        p["w1"] = 0.05 * jax.random.normal(ks2[1], (M, H), jnp.float32)
        p["b1"] = 0.02 * jax.random.normal(ks2[2], (1, M), jnp.float32)
        p["w2"] = 0.05 * jax.random.normal(ks2[3], (H, M), jnp.float32)
        p["b2"] = 0.02 * jax.random.normal(ks2[4], (1, H), jnp.float32)
        params.append(p)
    return params


if __name__ == "__main__":
    SEQ, BATCH, HIDDEN, HEADS, MLP_DIM, LAYERS = 8, 2, 32, 4, 64, 2

    key = jax.random.PRNGKey(0)
    kx, kp = jax.random.split(key)
    x = jax.random.normal(kx, (SEQ, BATCH, HIDDEN), jnp.float32)
    params = init_params(kp, LAYERS, HIDDEN, MLP_DIM)
    packed = pack_params(params, num_heads=HEADS)     # one-time host-side packing

    out, attn_ws = encoder_stack(x, packed, num_heads=HEADS, need_weights=True)
    out = jax.block_until_ready(out)
    attn_ws = [jax.block_until_ready(w) for w in attn_ws]

    ref_out, ref_ws = _reference(x, params, num_heads=HEADS)
    np.testing.assert_allclose(np.asarray(out), np.asarray(ref_out),
                               rtol=5e-3, atol=5e-3)
    for w, rw in zip(attn_ws, ref_ws):
        np.testing.assert_allclose(np.asarray(w), np.asarray(rw),
                                   rtol=5e-3, atol=5e-3)

    # Fast path: attention weights skipped (no (L,B,S,S) HBM writeback).
    out_nw, none_ws = encoder_stack(x, packed, num_heads=HEADS, need_weights=False)
    out_nw = jax.block_until_ready(out_nw)
    np.testing.assert_allclose(np.asarray(out_nw), np.asarray(ref_out),
                               rtol=5e-3, atol=5e-3)
    assert none_ws is None

    assert out.shape == (SEQ, BATCH, HIDDEN)
    assert all(w.shape == (BATCH, SEQ, SEQ) for w in attn_ws)
    print("KERNEL_OK")
</pallas_src>

<mosaic_0001>
module attributes {stable_mosaic.version = 11 : i64} {
  func.func @_encoder_stack_kernel(%arg0: i32, %arg1: i32, %arg2: memref<2x8x32xf32, #tpu.memory_space<vmem>>, %arg3: memref<1x9x32xf32, #tpu.memory_space<vmem>>, %arg4: memref<1x1x64xf32, #tpu.memory_space<vmem>>, %arg5: memref<1x32x32xbf16, #tpu.memory_space<vmem>>, %arg6: memref<1x32x32xbf16, #tpu.memory_space<vmem>>, %arg7: memref<1x32x32xbf16, #tpu.memory_space<vmem>>, %arg8: memref<1x32x32xbf16, #tpu.memory_space<vmem>>, %arg9: memref<1x32x64xbf16, #tpu.memory_space<vmem>>, %arg10: memref<1x64x32xbf16, #tpu.memory_space<vmem>>, %arg11: memref<2x8x32xf32, #tpu.memory_space<vmem>>, %arg12: memref<1x2x8x8xf32, #tpu.memory_space<vmem>>) attributes {dimension_semantics = [#tpu.dimension_semantics<parallel>, #tpu.dimension_semantics<arbitrary>], iteration_bounds = array<i64: 1, 2>, scalar_prefetch = 0 : i64, scratch_operands = 0 : i64, tpu.core_type = #tpu.core_type<tc>, window_params = [{transform_indices = @transform_0, window_bounds = array<i64: 2, 8, 32>}, {transform_indices = @transform_1, window_bounds = array<i64: 1, 9, 32>}, {transform_indices = @transform_2, window_bounds = array<i64: 1, 1, 64>}, {transform_indices = @transform_3, window_bounds = array<i64: 1, 32, 32>}, {transform_indices = @transform_4, window_bounds = array<i64: 1, 32, 32>}, {transform_indices = @transform_5, window_bounds = array<i64: 1, 32, 32>}, {transform_indices = @transform_6, window_bounds = array<i64: 1, 32, 32>}, {transform_indices = @transform_7, window_bounds = array<i64: 1, 32, 64>}, {transform_indices = @transform_8, window_bounds = array<i64: 1, 64, 32>}, {transform_indices = @transform_9, window_bounds = array<i64: 2, 8, 32>}, {transform_indices = @transform_10, window_bounds = array<i64: 1, 2, 8, 8>}]} {
    %c0_i32 = arith.constant 0 : i32
    %0 = arith.cmpi eq, %arg1, %c0_i32 : i32
    %1 = arith.extui %0 : i1 to i32
    %c0_i32_0 = arith.constant 0 : i32
    %2 = arith.cmpi ne, %1, %c0_i32_0 : i32
    scf.if %2 {
      %c0_80 = arith.constant 0 : index
      %c0_81 = arith.constant 0 : index
      %c0_82 = arith.constant 0 : index
      %211 = vector.load %arg2[%c0_80, %c0_81, %c0_82] : memref<2x8x32xf32, #tpu.memory_space<vmem>>, vector<2x8x32xf32>
      %c0_83 = arith.constant 0 : index
      %c0_84 = arith.constant 0 : index
      %c0_85 = arith.constant 0 : index
      %212 = vector.load %arg11[%c0_83, %c0_84, %c0_85] : memref<2x8x32xf32, #tpu.memory_space<vmem>>, vector<2x8x32xf32>
      tpu.vector_store %arg11[%c0_83, %c0_84, %c0_85], %211 {strides = array<i32>} : memref<2x8x32xf32, #tpu.memory_space<vmem>>, vector<2x8x32xf32>,
    } else {
    }
    %c0 = arith.constant 0 : index
    %c0_1 = arith.constant 0 : index
    %c0_2 = arith.constant 0 : index
    %3 = vector.load %arg3[%c0, %c0_1, %c0_2] : memref<1x9x32xf32, #tpu.memory_space<vmem>>, vector<1x9x32xf32>
    %4 = vector.shape_cast %3 : vector<1x9x32xf32> to vector<9x32xf32>
    %c0_3 = arith.constant 0 : index
    %c0_4 = arith.constant 0 : index
    %c0_5 = arith.constant 0 : index
    %5 = vector.load %arg11[%c0_3, %c0_4, %c0_5] : memref<2x8x32xf32, #tpu.memory_space<vmem>>, vector<2x8x32xf32>
    %6 = vector.shape_cast %5 : vector<2x8x32xf32> to vector<16x32xf32>
    %7 = vector.extract_strided_slice %4 {offsets = [0, 0], sizes = [1, 32], strides = [1, 1]} : vector<9x32xf32> to vector<1x32xf32>
    %8 = vector.extract_strided_slice %4 {offsets = [1, 0], sizes = [1, 32], strides = [1, 1]} : vector<9x32xf32> to vector<1x32xf32>
    %cst = arith.constant dense<0.000000e+00> : vector<16xf32>
    %9 = vector.multi_reduction <add>, %6, %cst [1] : vector<16x32xf32> to vector<16xf32>
    %10 = vector.shape_cast %9 : vector<16xf32> to vector<16x1xf32>
    %cst_6 = arith.constant 3.200000e+01 : f32
    %11 = vector.broadcast %cst_6 : f32 to vector<16x1xf32>
    %12 = arith.divf %10, %11 : vector<16x1xf32>
    %13 = vector.broadcast %12 : vector<16x1xf32> to vector<16x32xf32>
    %14 = arith.subf %6, %13 : vector<16x32xf32>
    %15 = arith.mulf %14, %14 : vector<16x32xf32>
    %cst_7 = arith.constant dense<0.000000e+00> : vector<16xf32>
    %16 = vector.multi_reduction <add>, %15, %cst_7 [1] : vector<16x32xf32> to vector<16xf32>
    %17 = vector.shape_cast %16 : vector<16xf32> to vector<16x1xf32>
    %cst_8 = arith.constant 3.200000e+01 : f32
    %18 = vector.broadcast %cst_8 : f32 to vector<16x1xf32>
    %19 = arith.divf %17, %18 : vector<16x1xf32>
    %20 = vector.broadcast %12 : vector<16x1xf32> to vector<16x32xf32>
    %21 = arith.subf %6, %20 : vector<16x32xf32>
    %cst_9 = arith.constant 9.99999974E-6 : f32
    %22 = vector.broadcast %cst_9 : f32 to vector<16x1xf32>
    %23 = arith.addf %19, %22 : vector<16x1xf32>
    %24 = math.rsqrt %23 : vector<16x1xf32>
    %25 = vector.broadcast %24 : vector<16x1xf32> to vector<16x32xf32>
    %26 = arith.mulf %21, %25 : vector<16x32xf32>
    %27 = vector.broadcast %7 : vector<1x32xf32> to vector<16x32xf32>
    %28 = arith.mulf %26, %27 : vector<16x32xf32>
    %29 = vector.broadcast %8 : vector<1x32xf32> to vector<16x32xf32>
    %30 = arith.addf %28, %29 : vector<16x32xf32>
    %c0_10 = arith.constant 0 : index
    %c0_11 = arith.constant 0 : index
    %c0_12 = arith.constant 0 : index
    %31 = vector.load %arg5[%c0_10, %c0_11, %c0_12] : memref<1x32x32xbf16, #tpu.memory_space<vmem>>, vector<1x32x32xbf16>
    %32 = vector.shape_cast %31 : vector<1x32x32xbf16> to vector<32x32xbf16>
    %33 = arith.truncf %30 : vector<16x32xf32> to vector<16x32xbf16>
    %cst_13 = arith.constant dense<0.000000e+00> : vector<16x32xf32>
    %34 = tpu.matmul %33, %32, %cst_13 {dimension_numbers = #tpu.dot_dimension_numbers<[1], [0], [0], [1], [0, 0, 1, 1], [], []>} : vector<16x32xbf16>, vector<32x32xbf16>, vector<16x32xf32> -> vector<16x32xf32>
    %35 = vector.extract_strided_slice %4 {offsets = [2, 0], sizes = [1, 32], strides = [1, 1]} : vector<9x32xf32> to vector<1x32xf32>
    %36 = vector.broadcast %35 : vector<1x32xf32> to vector<16x32xf32>
    %37 = arith.addf %34, %36 : vector<16x32xf32>
    %c0_14 = arith.constant 0 : index
    %c0_15 = arith.constant 0 : index
    %c0_16 = arith.constant 0 : index
    %38 = vector.load %arg6[%c0_14, %c0_15, %c0_16] : memref<1x32x32xbf16, #tpu.memory_space<vmem>>, vector<1x32x32xbf16>
    %39 = vector.shape_cast %38 : vector<1x32x32xbf16> to vector<32x32xbf16>
    %40 = arith.truncf %30 : vector<16x32xf32> to vector<16x32xbf16>
    %cst_17 = arith.constant dense<0.000000e+00> : vector<16x32xf32>
    %41 = tpu.matmul %40, %39, %cst_17 {dimension_numbers = #tpu.dot_dimension_numbers<[1], [0], [0], [1], [0, 0, 1, 1], [], []>} : vector<16x32xbf16>, vector<32x32xbf16>, vector<16x32xf32> -> vector<16x32xf32>
    %42 = vector.extract_strided_slice %4 {offsets = [3, 0], sizes = [1, 32], strides = [1, 1]} : vector<9x32xf32> to vector<1x32xf32>
    %43 = vector.broadcast %42 : vector<1x32xf32> to vector<16x32xf32>
    %44 = arith.addf %41, %43 : vector<16x32xf32>
    %c0_18 = arith.constant 0 : index
    %c0_19 = arith.constant 0 : index
    %c0_20 = arith.constant 0 : index
    %45 = vector.load %arg7[%c0_18, %c0_19, %c0_20] : memref<1x32x32xbf16, #tpu.memory_space<vmem>>, vector<1x32x32xbf16>
    %46 = vector.shape_cast %45 : vector<1x32x32xbf16> to vector<32x32xbf16>
    %47 = arith.truncf %30 : vector<16x32xf32> to vector<16x32xbf16>
    %cst_21 = arith.constant dense<0.000000e+00> : vector<16x32xf32>
    %48 = tpu.matmul %47, %46, %cst_21 {dimension_numbers = #tpu.dot_dimension_numbers<[1], [0], [0], [1], [0, 0, 1, 1], [], []>} : vector<16x32xbf16>, vector<32x32xbf16>, vector<16x32xf32> -> vector<16x32xf32>
    %49 = vector.extract_strided_slice %4 {offsets = [4, 0], sizes = [1, 32], strides = [1, 1]} : vector<9x32xf32> to vector<1x32xf32>
    %50 = vector.broadcast %49 : vector<1x32xf32> to vector<16x32xf32>
    %51 = arith.addf %48, %50 : vector<16x32xf32>
    %52 = vector.shape_cast %37 : vector<16x32xf32> to vector<2x8x32xf32>
    %53 = arith.truncf %52 : vector<2x8x32xf32> to vector<2x8x32xbf16>
    %54 = vector.shape_cast %44 : vector<16x32xf32> to vector<2x8x32xf32>
    %55 = arith.truncf %54 : vector<2x8x32xf32> to vector<2x8x32xbf16>
    %56 = vector.shape_cast %51 : vector<16x32xf32> to vector<2x8x32xf32>
    %57 = arith.truncf %56 : vector<2x8x32xf32> to vector<2x8x32xbf16>
    %cst_22 = arith.constant 0.000000e+00 : f32
    %58 = vector.broadcast %cst_22 : f32 to vector<16x32xf32>
    %cst_23 = arith.constant 0.000000e+00 : f32
    %59 = vector.broadcast %cst_23 : f32 to vector<2x8x8xf32>
    %60 = vector.extract_strided_slice %53 {offsets = [0, 0, 0], sizes = [2, 8, 8], strides = [1, 1, 1]} : vector<2x8x32xbf16> to vector<2x8x8xbf16>
    %61 = vector.extract_strided_slice %55 {offsets = [0, 0, 0], sizes = [2, 8, 8], strides = [1, 1, 1]} : vector<2x8x32xbf16> to vector<2x8x8xbf16>
    "tpu.trace_start"() <{level = 10 : i32, message = "bqd,bkd->bqk"}> : () -> ()
    %cst_24 = arith.constant dense<0.000000e+00> : vector<2x8x8xf32>
    %62 = tpu.matmul %60, %61, %cst_24 {dimension_numbers = #tpu.dot_dimension_numbers<[2], [2], [1], [1], [0, 0, 0, 1, 1, 1], [0], [0]>} : vector<2x8x8xbf16>, vector<2x8x8xbf16>, vector<2x8x8xf32> -> vector<2x8x8xf32>
    "tpu.trace_stop"() : () -> ()
    %cst_25 = arith.constant dense<0xFF800000> : vector<2x8xf32>
    %63 = vector.multi_reduction <maximumf>, %62, %cst_25 [2] : vector<2x8x8xf32> to vector<2x8xf32>
    %64 = vector.shape_cast %63 : vector<2x8xf32> to vector<2x8x1xf32>
    %65 = vector.broadcast %64 : vector<2x8x1xf32> to vector<2x8x8xf32>
    %66 = arith.subf %62, %65 : vector<2x8x8xf32>
    %67 = math.exp %66 : vector<2x8x8xf32>
    %cst_26 = arith.constant dense<0.000000e+00> : vector<2x8xf32>
    %68 = vector.multi_reduction <add>, %67, %cst_26 [2] : vector<2x8x8xf32> to vector<2x8xf32>
    %69 = vector.shape_cast %68 : vector<2x8xf32> to vector<2x8x1xf32>
    %70 = tpu.reciprocal %69 {approx = true} : vector<2x8x1xf32> -> vector<2x8x1xf32>
    %71 = vector.broadcast %70 : vector<2x8x1xf32> to vector<2x8x8xf32>
    %72 = arith.mulf %67, %71 : vector<2x8x8xf32>
    %73 = arith.addf %59, %72 : vector<2x8x8xf32>
    %74 = arith.truncf %72 : vector<2x8x8xf32> to vector<2x8x8xbf16>
    %75 = vector.extract_strided_slice %57 {offsets = [0, 0, 0], sizes = [2, 8, 8], strides = [1, 1, 1]} : vector<2x8x32xbf16> to vector<2x8x8xbf16>
    "tpu.trace_start"() <{level = 10 : i32, message = "bqk,bkd->bqd"}> : () -> ()
    %cst_27 = arith.constant dense<0.000000e+00> : vector<2x8x8xf32>
    %76 = tpu.matmul %74, %75, %cst_27 {dimension_numbers = #tpu.dot_dimension_numbers<[2], [1], [1], [2], [0, 0, 0, 1, 1, 2], [0], [0]>} : vector<2x8x8xbf16>, vector<2x8x8xbf16>, vector<2x8x8xf32> -> vector<2x8x8xf32>
    "tpu.trace_stop"() : () -> ()
    %77 = vector.shape_cast %76 : vector<2x8x8xf32> to vector<16x8xf32>
    %78 = arith.truncf %77 : vector<16x8xf32> to vector<16x8xbf16>
    %c0_28 = arith.constant 0 : index
    %c0_29 = arith.constant 0 : index
    %c0_30 = arith.constant 0 : index
    %79 = vector.load %arg8[%c0_28, %c0_29, %c0_30] : memref<1x32x32xbf16, #tpu.memory_space<vmem>>, vector<1x8x32xbf16>
    %80 = vector.shape_cast %79 : vector<1x8x32xbf16> to vector<8x32xbf16>
    %cst_31 = arith.constant dense<0.000000e+00> : vector<16x32xf32>
    %81 = tpu.matmul %78, %80, %cst_31 {dimension_numbers = #tpu.dot_dimension_numbers<[1], [0], [0], [1], [0, 0, 1, 1], [], []>} : vector<16x8xbf16>, vector<8x32xbf16>, vector<16x32xf32> -> vector<16x32xf32>
    %82 = arith.addf %58, %81 : vector<16x32xf32>
    %83 = vector.extract_strided_slice %53 {offsets = [0, 0, 8], sizes = [2, 8, 8], strides = [1, 1, 1]} : vector<2x8x32xbf16> to vector<2x8x8xbf16>
    %84 = vector.extract_strided_slice %55 {offsets = [0, 0, 8], sizes = [2, 8, 8], strides = [1, 1, 1]} : vector<2x8x32xbf16> to vector<2x8x8xbf16>
    "tpu.trace_start"() <{level = 10 : i32, message = "bqd,bkd->bqk"}> : () -> ()
    %cst_32 = arith.constant dense<0.000000e+00> : vector<2x8x8xf32>
    %85 = tpu.matmul %83, %84, %cst_32 {dimension_numbers = #tpu.dot_dimension_numbers<[2], [2], [1], [1], [0, 0, 0, 1, 1, 1], [0], [0]>} : vector<2x8x8xbf16>, vector<2x8x8xbf16>, vector<2x8x8xf32> -> vector<2x8x8xf32>
    "tpu.trace_stop"() : () -> ()
    %cst_33 = arith.constant dense<0xFF800000> : vector<2x8xf32>
    %86 = vector.multi_reduction <maximumf>, %85, %cst_33 [2] : vector<2x8x8xf32> to vector<2x8xf32>
    %87 = vector.shape_cast %86 : vector<2x8xf32> to vector<2x8x1xf32>
    %88 = vector.broadcast %87 : vector<2x8x1xf32> to vector<2x8x8xf32>
    %89 = arith.subf %85, %88 : vector<2x8x8xf32>
    %90 = math.exp %89 : vector<2x8x8xf32>
    %cst_34 = arith.constant dense<0.000000e+00> : vector<2x8xf32>
    %91 = vector.multi_reduction <add>, %90, %cst_34 [2] : vector<2x8x8xf32> to vector<2x8xf32>
    %92 = vector.shape_cast %91 : vector<2x8xf32> to vector<2x8x1xf32>
    %93 = tpu.reciprocal %92 {approx = true} : vector<2x8x1xf32> -> vector<2x8x1xf32>
    %94 = vector.broadcast %93 : vector<2x8x1xf32> to vector<2x8x8xf32>
    %95 = arith.mulf %90, %94 : vector<2x8x8xf32>
    %96 = arith.addf %73, %95 : vector<2x8x8xf32>
    %97 = arith.truncf %95 : vector<2x8x8xf32> to vector<2x8x8xbf16>
    %98 = vector.extract_strided_slice %57 {offsets = [0, 0, 8], sizes = [2, 8, 8], strides = [1, 1, 1]} : vector<2x8x32xbf16> to vector<2x8x8xbf16>
    "tpu.trace_start"() <{level = 10 : i32, message = "bqk,bkd->bqd"}> : () -> ()
    %cst_35 = arith.constant dense<0.000000e+00> : vector<2x8x8xf32>
    %99 = tpu.matmul %97, %98, %cst_35 {dimension_numbers = #tpu.dot_dimension_numbers<[2], [1], [1], [2], [0, 0, 0, 1, 1, 2], [0], [0]>} : vector<2x8x8xbf16>, vector<2x8x8xbf16>, vector<2x8x8xf32> -> vector<2x8x8xf32>
    "tpu.trace_stop"() : () -> ()
    %100 = vector.shape_cast %99 : vector<2x8x8xf32> to vector<16x8xf32>
    %101 = arith.truncf %100 : vector<16x8xf32> to vector<16x8xbf16>
    %c0_36 = arith.constant 0 : index
    %c8 = arith.constant 8 : index
    %c0_37 = arith.constant 0 : index
    %102 = vector.load %arg8[%c0_36, %c8, %c0_37] : memref<1x32x32xbf16, #tpu.memory_space<vmem>>, vector<1x8x32xbf16>
    %103 = vector.shape_cast %102 : vector<1x8x32xbf16> to vector<8x32xbf16>
    %cst_38 = arith.constant dense<0.000000e+00> : vector<16x32xf32>
    %104 = tpu.matmul %101, %103, %cst_38 {dimension_numbers = #tpu.dot_dimension_numbers<[1], [0], [0], [1], [0, 0, 1, 1], [], []>} : vector<16x8xbf16>, vector<8x32xbf16>, vector<16x32xf32> -> vector<16x32xf32>
    %105 = arith.addf %82, %104 : vector<16x32xf32>
    %106 = vector.extract_strided_slice %53 {offsets = [0, 0, 16], sizes = [2, 8, 8], strides = [1, 1, 1]} : vector<2x8x32xbf16> to vector<2x8x8xbf16>
    %107 = vector.extract_strided_slice %55 {offsets = [0, 0, 16], sizes = [2, 8, 8], strides = [1, 1, 1]} : vector<2x8x32xbf16> to vector<2x8x8xbf16>
    "tpu.trace_start"() <{level = 10 : i32, message = "bqd,bkd->bqk"}> : () -> ()
    %cst_39 = arith.constant dense<0.000000e+00> : vector<2x8x8xf32>
    %108 = tpu.matmul %106, %107, %cst_39 {dimension_numbers = #tpu.dot_dimension_numbers<[2], [2], [1], [1], [0, 0, 0, 1, 1, 1], [0], [0]>} : vector<2x8x8xbf16>, vector<2x8x8xbf16>, vector<2x8x8xf32> -> vector<2x8x8xf32>
    "tpu.trace_stop"() : () -> ()
    %cst_40 = arith.constant dense<0xFF800000> : vector<2x8xf32>
    %109 = vector.multi_reduction <maximumf>, %108, %cst_40 [2] : vector<2x8x8xf32> to vector<2x8xf32>
    %110 = vector.shape_cast %109 : vector<2x8xf32> to vector<2x8x1xf32>
    %111 = vector.broadcast %110 : vector<2x8x1xf32> to vector<2x8x8xf32>
    %112 = arith.subf %108, %111 : vector<2x8x8xf32>
    %113 = math.exp %112 : vector<2x8x8xf32>
    %cst_41 = arith.constant dense<0.000000e+00> : vector<2x8xf32>
    %114 = vector.multi_reduction <add>, %113, %cst_41 [2] : vector<2x8x8xf32> to vector<2x8xf32>
    %115 = vector.shape_cast %114 : vector<2x8xf32> to vector<2x8x1xf32>
    %116 = tpu.reciprocal %115 {approx = true} : vector<2x8x1xf32> -> vector<2x8x1xf32>
    %117 = vector.broadcast %116 : vector<2x8x1xf32> to vector<2x8x8xf32>
    %118 = arith.mulf %113, %117 : vector<2x8x8xf32>
    %119 = arith.addf %96, %118 : vector<2x8x8xf32>
    %120 = arith.truncf %118 : vector<2x8x8xf32> to vector<2x8x8xbf16>
    %121 = vector.extract_strided_slice %57 {offsets = [0, 0, 16], sizes = [2, 8, 8], strides = [1, 1, 1]} : vector<2x8x32xbf16> to vector<2x8x8xbf16>
    "tpu.trace_start"() <{level = 10 : i32, message = "bqk,bkd->bqd"}> : () -> ()
    %cst_42 = arith.constant dense<0.000000e+00> : vector<2x8x8xf32>
    %122 = tpu.matmul %120, %121, %cst_42 {dimension_numbers = #tpu.dot_dimension_numbers<[2], [1], [1], [2], [0, 0, 0, 1, 1, 2], [0], [0]>} : vector<2x8x8xbf16>, vector<2x8x8xbf16>, vector<2x8x8xf32> -> vector<2x8x8xf32>
    "tpu.trace_stop"() : () -> ()
    %123 = vector.shape_cast %122 : vector<2x8x8xf32> to vector<16x8xf32>
    %124 = arith.truncf %123 : vector<16x8xf32> to vector<16x8xbf16>
    %c0_43 = arith.constant 0 : index
    %c16 = arith.constant 16 : index
    %c0_44 = arith.constant 0 : index
    %125 = vector.load %arg8[%c0_43, %c16, %c0_44] : memref<1x32x32xbf16, #tpu.memory_space<vmem>>, vector<1x8x32xbf16>
    %126 = vector.shape_cast %125 : vector<1x8x32xbf16> to vector<8x32xbf16>
    %cst_45 = arith.constant dense<0.000000e+00> : vector<16x32xf32>
    %127 = tpu.matmul %124, %126, %cst_45 {dimension_numbers = #tpu.dot_dimension_numbers<[1], [0], [0], [1], [0, 0, 1, 1], [], []>} : vector<16x8xbf16>, vector<8x32xbf16>, vector<16x32xf32> -> vector<16x32xf32>
    %128 = arith.addf %105, %127 : vector<16x32xf32>
    %129 = vector.extract_strided_slice %53 {offsets = [0, 0, 24], sizes = [2, 8, 8], strides = [1, 1, 1]} : vector<2x8x32xbf16> to vector<2x8x8xbf16>
    %130 = vector.extract_strided_slice %55 {offsets = [0, 0, 24], sizes = [2, 8, 8], strides = [1, 1, 1]} : vector<2x8x32xbf16> to vector<2x8x8xbf16>
    "tpu.trace_start"() <{level = 10 : i32, message = "bqd,bkd->bqk"}> : () -> ()
    %cst_46 = arith.constant dense<0.000000e+00> : vector<2x8x8xf32>
    %131 = tpu.matmul %129, %130, %cst_46 {dimension_numbers = #tpu.dot_dimension_numbers<[2], [2], [1], [1], [0, 0, 0, 1, 1, 1], [0], [0]>} : vector<2x8x8xbf16>, vector<2x8x8xbf16>, vector<2x8x8xf32> -> vector<2x8x8xf32>
    "tpu.trace_stop"() : () -> ()
    %cst_47 = arith.constant dense<0xFF800000> : vector<2x8xf32>
    %132 = vector.multi_reduction <maximumf>, %131, %cst_47 [2] : vector<2x8x8xf32> to vector<2x8xf32>
    %133 = vector.shape_cast %132 : vector<2x8xf32> to vector<2x8x1xf32>
    %134 = vector.broadcast %133 : vector<2x8x1xf32> to vector<2x8x8xf32>
    %135 = arith.subf %131, %134 : vector<2x8x8xf32>
    %136 = math.exp %135 : vector<2x8x8xf32>
    %cst_48 = arith.constant dense<0.000000e+00> : vector<2x8xf32>
    %137 = vector.multi_reduction <add>, %136, %cst_48 [2] : vector<2x8x8xf32> to vector<2x8xf32>
    %138 = vector.shape_cast %137 : vector<2x8xf32> to vector<2x8x1xf32>
    %139 = tpu.reciprocal %138 {approx = true} : vector<2x8x1xf32> -> vector<2x8x1xf32>
    %140 = vector.broadcast %139 : vector<2x8x1xf32> to vector<2x8x8xf32>
    %141 = arith.mulf %136, %140 : vector<2x8x8xf32>
    %142 = arith.addf %119, %141 : vector<2x8x8xf32>
    %143 = arith.truncf %141 : vector<2x8x8xf32> to vector<2x8x8xbf16>
    %144 = vector.extract_strided_slice %57 {offsets = [0, 0, 24], sizes = [2, 8, 8], strides = [1, 1, 1]} : vector<2x8x32xbf16> to vector<2x8x8xbf16>
    "tpu.trace_start"() <{level = 10 : i32, message = "bqk,bkd->bqd"}> : () -> ()
    %cst_49 = arith.constant dense<0.000000e+00> : vector<2x8x8xf32>
    %145 = tpu.matmul %143, %144, %cst_49 {dimension_numbers = #tpu.dot_dimension_numbers<[2], [1], [1], [2], [0, 0, 0, 1, 1, 2], [0], [0]>} : vector<2x8x8xbf16>, vector<2x8x8xbf16>, vector<2x8x8xf32> -> vector<2x8x8xf32>
    "tpu.trace_stop"() : () -> ()
    %146 = vector.shape_cast %145 : vector<2x8x8xf32> to vector<16x8xf32>
    %147 = arith.truncf %146 : vector<16x8xf32> to vector<16x8xbf16>
    %c0_50 = arith.constant 0 : index
    %c24 = arith.constant 24 : index
    %c0_51 = arith.constant 0 : index
    %148 = vector.load %arg8[%c0_50, %c24, %c0_51] : memref<1x32x32xbf16, #tpu.memory_space<vmem>>, vector<1x8x32xbf16>
    %149 = vector.shape_cast %148 : vector<1x8x32xbf16> to vector<8x32xbf16>
    %cst_52 = arith.constant dense<0.000000e+00> : vector<16x32xf32>
    %150 = tpu.matmul %147, %149, %cst_52 {dimension_numbers = #tpu.dot_dimension_numbers<[1], [0], [0], [1], [0, 0, 1, 1], [], []>} : vector<16x8xbf16>, vector<8x32xbf16>, vector<16x32xf32> -> vector<16x32xf32>
    %151 = arith.addf %128, %150 : vector<16x32xf32>
    %cst_53 = arith.constant 2.500000e-01 : f32
    %152 = vector.broadcast %cst_53 : f32 to vector<2x8x8xf32>
    %153 = arith.mulf %142, %152 : vector<2x8x8xf32>
    %c0_54 = arith.constant 0 : index
    %c0_55 = arith.constant 0 : index
    %c0_56 = arith.constant 0 : index
    %c0_57 = arith.constant 0 : index
    %154 = vector.load %arg12[%c0_54, %c0_55, %c0_56, %c0_57] : memref<1x2x8x8xf32, #tpu.memory_space<vmem>>, vector<1x2x8x8xf32>
    %155 = vector.shape_cast %154 : vector<1x2x8x8xf32> to vector<2x8x8xf32>
    %156 = vector.shape_cast %153 : vector<2x8x8xf32> to vector<1x2x8x8xf32>
    tpu.vector_store %arg12[%c0_54, %c0_55, %c0_56, %c0_57], %156 {strides = array<i32>} : memref<1x2x8x8xf32, #tpu.memory_space<vmem>>, vector<1x2x8x8xf32>,
    %157 = arith.addf %6, %151 : vector<16x32xf32>
    %158 = vector.extract_strided_slice %4 {offsets = [5, 0], sizes = [1, 32], strides = [1, 1]} : vector<9x32xf32> to vector<1x32xf32>
    %159 = vector.broadcast %158 : vector<1x32xf32> to vector<16x32xf32>
    %160 = arith.addf %157, %159 : vector<16x32xf32>
    %161 = vector.extract_strided_slice %4 {offsets = [6, 0], sizes = [1, 32], strides = [1, 1]} : vector<9x32xf32> to vector<1x32xf32>
    %162 = vector.extract_strided_slice %4 {offsets = [7, 0], sizes = [1, 32], strides = [1, 1]} : vector<9x32xf32> to vector<1x32xf32>
    %cst_58 = arith.constant dense<0.000000e+00> : vector<16xf32>
    %163 = vector.multi_reduction <add>, %160, %cst_58 [1] : vector<16x32xf32> to vector<16xf32>
    %164 = vector.shape_cast %163 : vector<16xf32> to vector<16x1xf32>
    %cst_59 = arith.constant 3.200000e+01 : f32
    %165 = vector.broadcast %cst_59 : f32 to vector<16x1xf32>
    %166 = arith.divf %164, %165 : vector<16x1xf32>
    %167 = vector.broadcast %166 : vector<16x1xf32> to vector<16x32xf32>
    %168 = arith.subf %160, %167 : vector<16x32xf32>
    %169 = arith.mulf %168, %168 : vector<16x32xf32>
    %cst_60 = arith.constant dense<0.000000e+00> : vector<16xf32>
    %170 = vector.multi_reduction <add>, %169, %cst_60 [1] : vector<16x32xf32> to vector<16xf32>
    %171 = vector.shape_cast %170 : vector<16xf32> to vector<16x1xf32>
    %cst_61 = arith.constant 3.200000e+01 : f32
    %172 = vector.broadcast %cst_61 : f32 to vector<16x1xf32>
    %173 = arith.divf %171, %172 : vector<16x1xf32>
    %174 = vector.broadcast %166 : vector<16x1xf32> to vector<16x32xf32>
    %175 = arith.subf %160, %174 : vector<16x32xf32>
    %cst_62 = arith.constant 9.99999974E-6 : f32
    %176 = vector.broadcast %cst_62 : f32 to vector<16x1xf32>
    %177 = arith.addf %173, %176 : vector<16x1xf32>
    %178 = math.rsqrt %177 : vector<16x1xf32>
    %179 = vector.broadcast %178 : vector<16x1xf32> to vector<16x32xf32>
    %180 = arith.mulf %175, %179 : vector<16x32xf32>
    %181 = vector.broadcast %161 : vector<1x32xf32> to vector<16x32xf32>
    %182 = arith.mulf %180, %181 : vector<16x32xf32>
    %183 = vector.broadcast %162 : vector<1x32xf32> to vector<16x32xf32>
    %184 = arith.addf %182, %183 : vector<16x32xf32>
    %c0_63 = arith.constant 0 : index
    %c0_64 = arith.constant 0 : index
    %c0_65 = arith.constant 0 : index
    %185 = vector.load %arg9[%c0_63, %c0_64, %c0_65] : memref<1x32x64xbf16, #tpu.memory_space<vmem>>, vector<1x32x64xbf16>
    %186 = vector.shape_cast %185 : vector<1x32x64xbf16> to vector<32x64xbf16>
    %187 = arith.truncf %184 : vector<16x32xf32> to vector<16x32xbf16>
    %cst_66 = arith.constant dense<0.000000e+00> : vector<16x64xf32>
    %188 = tpu.matmul %187, %186, %cst_66 {dimension_numbers = #tpu.dot_dimension_numbers<[1], [0], [0], [1], [0, 0, 1, 1], [], []>} : vector<16x32xbf16>, vector<32x64xbf16>, vector<16x64xf32> -> vector<16x64xf32>
    %c0_67 = arith.constant 0 : index
    %c0_68 = arith.constant 0 : index
    %c0_69 = arith.constant 0 : index
    %189 = vector.load %arg4[%c0_67, %c0_68, %c0_69] : memref<1x1x64xf32, #tpu.memory_space<vmem>>, vector<1x1x64xf32>
    %190 = vector.shape_cast %189 : vector<1x1x64xf32> to vector<1x64xf32>
    %191 = vector.broadcast %190 : vector<1x64xf32> to vector<16x64xf32>
    %192 = arith.addf %188, %191 : vector<16x64xf32>
    %cst_70 = arith.constant 5.000000e-01 : f32
    %193 = vector.broadcast %cst_70 : f32 to vector<16x64xf32>
    %194 = arith.mulf %193, %192 : vector<16x64xf32>
    %cst_71 = arith.constant 0.707106769 : f32
    %195 = vector.broadcast %cst_71 : f32 to vector<16x64xf32>
    %196 = arith.mulf %192, %195 : vector<16x64xf32>
    %197 = math.erf %196 : vector<16x64xf32>
    %cst_72 = arith.constant 1.000000e+00 : f32
    %198 = vector.broadcast %cst_72 : f32 to vector<16x64xf32>
    %199 = arith.addf %198, %197 : vector<16x64xf32>
    %200 = arith.mulf %194, %199 : vector<16x64xf32>
    %c0_73 = arith.constant 0 : index
    %c0_74 = arith.constant 0 : index
    %c0_75 = arith.constant 0 : index
    %201 = vector.load %arg10[%c0_73, %c0_74, %c0_75] : memref<1x64x32xbf16, #tpu.memory_space<vmem>>, vector<1x64x32xbf16>
    %202 = vector.shape_cast %201 : vector<1x64x32xbf16> to vector<64x32xbf16>
    %203 = arith.truncf %200 : vector<16x64xf32> to vector<16x64xbf16>
    %cst_76 = arith.constant dense<0.000000e+00> : vector<16x32xf32>
    %204 = tpu.matmul %203, %202, %cst_76 {dimension_numbers = #tpu.dot_dimension_numbers<[1], [0], [0], [1], [0, 0, 1, 1], [], []>} : vector<16x64xbf16>, vector<64x32xbf16>, vector<16x32xf32> -> vector<16x32xf32>
    %205 = vector.extract_strided_slice %4 {offsets = [8, 0], sizes = [1, 32], strides = [1, 1]} : vector<9x32xf32> to vector<1x32xf32>
    %206 = vector.broadcast %205 : vector<1x32xf32> to vector<16x32xf32>
    %207 = arith.addf %204, %206 : vector<16x32xf32>
    %208 = arith.addf %160, %207 : vector<16x32xf32>
    %209 = vector.shape_cast %208 : vector<16x32xf32> to vector<2x8x32xf32>
    %c0_77 = arith.constant 0 : index
    %c0_78 = arith.constant 0 : index
    %c0_79 = arith.constant 0 : index
    %210 = vector.load %arg11[%c0_77, %c0_78, %c0_79] : memref<2x8x32xf32, #tpu.memory_space<vmem>>, vector<2x8x32xf32>
    tpu.vector_store %arg11[%c0_77, %c0_78, %c0_79], %209 {strides = array<i32>} : memref<2x8x32xf32, #tpu.memory_space<vmem>>, vector<2x8x32xf32>,
    return
  }
  func.func @transform_0(%arg0: i32, %arg1: i32) -> (i32, i32, i32) {
    %c0_i32 = arith.constant 0 : i32
    %c0_i32_0 = arith.constant 0 : i32
    %c0_i32_1 = arith.constant 0 : i32
    return %arg0, %c0_i32, %c0_i32_0 : i32, i32, i32
  }
  func.func @transform_1(%arg0: i32, %arg1: i32) -> (i32, i32, i32) {
    %c0_i32 = arith.constant 0 : i32
    %c0_i32_0 = arith.constant 0 : i32
    %c0_i32_1 = arith.constant 0 : i32
    return %arg1, %c0_i32, %c0_i32_0 : i32, i32, i32
  }
  func.func @transform_2(%arg0: i32, %arg1: i32) -> (i32, i32, i32) {
    %c0_i32 = arith.constant 0 : i32
    %c0_i32_0 = arith.constant 0 : i32
    %c0_i32_1 = arith.constant 0 : i32
    return %arg1, %c0_i32, %c0_i32_0 : i32, i32, i32
  }
  func.func @transform_3(%arg0: i32, %arg1: i32) -> (i32, i32, i32) {
    %c0_i32 = arith.constant 0 : i32
    %c0_i32_0 = arith.constant 0 : i32
    %c0_i32_1 = arith.constant 0 : i32
    return %arg1, %c0_i32, %c0_i32_0 : i32, i32, i32
  }
  func.func @transform_4(%arg0: i32, %arg1: i32) -> (i32, i32, i32) {
    %c0_i32 = arith.constant 0 : i32
    %c0_i32_0 = arith.constant 0 : i32
    %c0_i32_1 = arith.constant 0 : i32
    return %arg1, %c0_i32, %c0_i32_0 : i32, i32, i32
  }
  func.func @transform_5(%arg0: i32, %arg1: i32) -> (i32, i32, i32) {
    %c0_i32 = arith.constant 0 : i32
    %c0_i32_0 = arith.constant 0 : i32
    %c0_i32_1 = arith.constant 0 : i32
    return %arg1, %c0_i32, %c0_i32_0 : i32, i32, i32
  }
  func.func @transform_6(%arg0: i32, %arg1: i32) -> (i32, i32, i32) {
    %c0_i32 = arith.constant 0 : i32
    %c0_i32_0 = arith.constant 0 : i32
    %c0_i32_1 = arith.constant 0 : i32
    return %arg1, %c0_i32, %c0_i32_0 : i32, i32, i32
  }
  func.func @transform_7(%arg0: i32, %arg1: i32) -> (i32, i32, i32) {
    %c0_i32 = arith.constant 0 : i32
    %c0_i32_0 = arith.constant 0 : i32
    %c0_i32_1 = arith.constant 0 : i32
    return %arg1, %c0_i32, %c0_i32_0 : i32, i32, i32
  }
  func.func @transform_8(%arg0: i32, %arg1: i32) -> (i32, i32, i32) {
    %c0_i32 = arith.constant 0 : i32
    %c0_i32_0 = arith.constant 0 : i32
    %c0_i32_1 = arith.constant 0 : i32
    return %arg1, %c0_i32, %c0_i32_0 : i32, i32, i32
  }
  func.func @transform_9(%arg0: i32, %arg1: i32) -> (i32, i32, i32) {
    %c0_i32 = arith.constant 0 : i32
    %c0_i32_0 = arith.constant 0 : i32
    %c0_i32_1 = arith.constant 0 : i32
    return %arg0, %c0_i32, %c0_i32_0 : i32, i32, i32
  }
  func.func @transform_10(%arg0: i32, %arg1: i32) -> (i32, i32, i32, i32) {
    %c0_i32 = arith.constant 0 : i32
    %c0_i32_0 = arith.constant 0 : i32
    %c0_i32_1 = arith.constant 0 : i32
    return %arg1, %arg0, %c0_i32, %c0_i32_0 : i32, i32, i32, i32
  }
}

</mosaic_0001>

<llo_original>
// kernel: tpu_custom_call.1
$region0: #{tpu_custom_call.1}
  #allocation0 [shape = 'u32[]', space=smem, size = 0x4, offset = 0x4, fixed_abs, tag = 'smem constant byte address 0x4 - core index']
  #allocation1 [shape = 'u32[144,128]{1,0:T(1,128)}', space=vmem, size = 0x12000, scoped, tag = 'internal scratch']
  %s0 = inlined_call_operand.hbm [shape: f32[2,8,32], index: 0, kind: input, shape index: {}]
  %s1 = inlined_call_operand.vmem [shape: f32[2,9,32], index: 1, kind: input, shape index: {}]
  %s2 = inlined_call_operand.hbm [shape: f32[2,1,64], index: 2, kind: input, shape index: {}]
  %s3 = inlined_call_operand.vmem [shape: bf16[2,32,32], index: 3, kind: input, shape index: {}]
  %s4 = inlined_call_operand.vmem [shape: bf16[2,32,32], index: 4, kind: input, shape index: {}]
  %s5 = inlined_call_operand.vmem [shape: bf16[2,32,32], index: 5, kind: input, shape index: {}]
  %s6 = inlined_call_operand.vmem [shape: bf16[2,32,32], index: 6, kind: input, shape index: {}]
  %s7 = inlined_call_operand.hbm [shape: bf16[2,32,64], index: 7, kind: input, shape index: {}]
  %s8 = inlined_call_operand.vmem [shape: bf16[2,64,32], index: 8, kind: input, shape index: {}]
  %s9 = inlined_call_operand.hbm [shape: f32[2,8,32], index: 9, kind: output, shape index: {0}]
  %s10 = inlined_call_operand.hbm [shape: f32[2,2,8,8], index: 10, kind: output, shape index: {1}]
  %11 = xla_tuple %s9, %s10
  %s12 = sld [smem:[#allocation0]]
  $region93: #{tpu_custom_call.1} parent=0
    _
  %s14 = ssub.s32 1, %s12
  %s15 = scalar_select 0, %s14, %s12
  $region1: #{tpu_custom_call.1} parent=0
    #allocation2 [shape = 'u8[8192]{0}', space=vmem, size = 0x2000, scoped, tag = 'input window, operand 0, single buffered']
    #allocation3 [shape = 's32[2]{0}', space=sflag, size = 0x8, scoped, tag = 'scoped memory for tpu_custom_call.1']
    #allocation4 [shape = 's32[2]{0}', space=sflag, size = 0x8, scoped, tag = 'scoped memory for tpu_custom_call.1']
    #allocation5 [shape = 'u8[1024]{0}', space=vmem, size = 0x400, scoped, tag = 'input window, operand 2']
    #allocation6 [shape = 's32[2]{0}', space=sflag, size = 0x8, scoped, tag = 'scoped memory for tpu_custom_call.1']
    #allocation7 [shape = 'u8[16384]{0}', space=vmem, size = 0x4000, scoped, tag = 'input window, operand 7']
    #allocation8 [shape = 'u8[8192]{0}', space=vmem, size = 0x2000, scoped, tag = 'output window, operand 0, single buffered']
    #allocation9 [shape = 'u8[16384]{0}', space=vmem, size = 0x4000, scoped, tag = 'output window, operand 1']
    #allocation10 [shape = 's32[2]{0}', space=sflag, size = 0x8, scoped, tag = 'scoped memory for tpu_custom_call.1']
    %16 = vsyncpa [#allocation3], 0
    %17 = vsyncpa [#allocation6], 0
    %s18 = scalar_lea.sflag [#allocation6], 1
    %19 = vsyncpa %s18, 0
    %20 = vsyncpa [#allocation4], 0
    %21 = vsyncpa [#allocation10], 0
    %s22 = scalar_lea.sflag [#allocation10], 1
    %23 = vsyncpa %s22, 0
    loop: start=0, step=1, limit=4
    $region2: #{tpu_custom_call.1} parent=1 // loop_pre_header
      _
    $region3: #{tpu_custom_call.1} parent=1 // loop_header
      %s25 = sphi 0, %s29
      %p26 = scmp.ge.s32.totalorder %s25, 4
      %s32 = sphi 0, %s44
      %s33 = sphi 0, %s40
      %s34 = sphi 0, %s32
      %s35 = sphi 0, %s33
      %s36 = sphi 0, %s34
      %s37 = sphi 0, %s35
      %s47 = sphi 0, %s49
      %s50 = sphi 0, %s47
      %s51 = sphi 0, %s50
      %s67 = sphi 0, %s51
      %s73 = sphi 0, %s75
      %s76 = sphi 0, %s73
      %s77 = sphi 0, %s76
      %s93 = sphi 0, %s77
      %s99 = sphi 0, %s101
      %s102 = sphi 0, %s99
      %s103 = sphi 0, %s102
      %s119 = sphi 0, %s103
      %s125 = sphi 0, %s127
      %s128 = sphi 0, %s125
      %s129 = sphi 0, %s128
      %s145 = sphi 0, %s129
      %s151 = sphi 0, %s153
      %s154 = sphi 0, %s151
      %s155 = sphi 0, %s154
      %s171 = sphi 0, %s155
      %s177 = sphi 0, %s179
      %s180 = sphi 0, %s177
      %s181 = sphi 0, %s180
      %s197 = sphi 0, %s181
      %s203 = sphi 0, %s205
      %s206 = sphi 0, %s203
      %s207 = sphi 0, %s206
      %s223 = sphi 0, %s207
      %s229 = sphi 0, %s231
      %s232 = sphi 0, %s229
      %s233 = sphi 0, %s232
      %s249 = sphi 0, %s233
      %s255 = sphi 0, %s257
      %s258 = sphi 0, %s255
      %s259 = sphi 0, %s258
      %s275 = sphi 0, %s259
      %s281 = sphi 0, %s283
      %s284 = sphi 0, %s281
      %s285 = sphi 0, %s284
      %s301 = sphi 0, %s285
      %s309 = sphi 0, %s311
      %s312 = sphi 0, %s309
      %s313 = sphi 0, %s312
      %s329 = sphi 0, %s313
    $region4: #{tpu_custom_call.1} parent=1 // loop_header_branch
      %28 = sbr.rel (%p26) target = $region8
    $region5: #{tpu_custom_call.1} parent=1 // loop_body
      %s30 = ssub.s32 %s25, 1
      %s31 = ssub.s32 %s25, 2
      %s38 = sadd.s32 1, %s33
      %p39 = scmp.ge.s32.totalorder %s38, 2
      %s40 = scalar_select %p39, 0, %s38
      %s41 = sadd.s32 1, %s32
      %s42 = scalar_select %p39, %s41, %s32
      %p43 = scmp.ge.s32.totalorder %s42, 1
      %s44 = scalar_select %p43, 0, %s42
      %s45 = ssub.s32 %s32, %s44
      %p46 = scmp.eq.s32.totalorder %s45, 0
      %s48 = sadd.s32 %s47, 1
      %s49 = scalar_select %p46, %s47, %s48
      %p52 = pneg %p46
      %p53 = scmp.eq.s32.totalorder %s25, 1
      %p54 = por %p52, %p53
      %p55 = scmp.ne.s32.totalorder %s47, %s50
      %p56 = scmp.eq.s32.totalorder %s25, 0
      %p57 = por %p55, %p56
      %p58 = scmp.ne.s32.totalorder %s47, %s50
      %p59 = scmp.eq.s32.totalorder %s30, 1
      %p60 = por %p58, %p59
      %p61 = scmp.ne.s32.totalorder %s50, %s51
      %p62 = scmp.eq.s32.totalorder %s30, 0
      %p63 = por %p61, %p62
      %p64 = scmp.ne.s32.totalorder %s50, %s51
      %p65 = scmp.eq.s32.totalorder %s31, 1
      %p66 = por %p64, %p65
      %p68 = scmp.ne.s32.totalorder %s51, %s67
      %p69 = scmp.eq.s32.totalorder %s31, 0
      %p70 = por %p68, %p69
      %s71 = ssub.s32 %s33, %s40
      %p72 = scmp.eq.s32.totalorder %s71, 0
      %s74 = sadd.s32 %s73, 1
      %s75 = scalar_select %p72, %s73, %s74
      %p78 = pneg %p72
      %p79 = scmp.eq.s32.totalorder %s25, 1
      %p80 = por %p78, %p79
      %p81 = scmp.ne.s32.totalorder %s73, %s76
      %p82 = scmp.eq.s32.totalorder %s25, 0
      %p83 = por %p81, %p82
      %p84 = scmp.ne.s32.totalorder %s73, %s76
      %p85 = scmp.eq.s32.totalorder %s30, 1
      %p86 = por %p84, %p85
      %p87 = scmp.ne.s32.totalorder %s76, %s77
      %p88 = scmp.eq.s32.totalorder %s30, 0
      %p89 = por %p87, %p88
      %p90 = scmp.ne.s32.totalorder %s76, %s77
      %p91 = scmp.eq.s32.totalorder %s31, 1
      %p92 = por %p90, %p91
      %p94 = scmp.ne.s32.totalorder %s77, %s93
      %p95 = scmp.eq.s32.totalorder %s31, 0
      %p96 = por %p94, %p95
      %s97 = ssub.s32 %s33, %s40
      %p98 = scmp.eq.s32.totalorder %s97, 0
      %s100 = sadd.s32 %s99, 1
      %s101 = scalar_select %p98, %s99, %s100
      %p104 = pneg %p98
      %p105 = scmp.eq.s32.totalorder %s25, 1
      %p106 = por %p104, %p105
      %p107 = scmp.ne.s32.totalorder %s99, %s102
      %p108 = scmp.eq.s32.totalorder %s25, 0
      %p109 = por %p107, %p108
      %p110 = scmp.ne.s32.totalorder %s99, %s102
      %p111 = scmp.eq.s32.totalorder %s30, 1
      %p112 = por %p110, %p111
      %p113 = scmp.ne.s32.totalorder %s102, %s103
      %p114 = scmp.eq.s32.totalorder %s30, 0
      %p115 = por %p113, %p114
      %p116 = scmp.ne.s32.totalorder %s102, %s103
      %p117 = scmp.eq.s32.totalorder %s31, 1
      %p118 = por %p116, %p117
      %p120 = scmp.ne.s32.totalorder %s103, %s119
      %p121 = scmp.eq.s32.totalorder %s31, 0
      %p122 = por %p120, %p121
      %s123 = ssub.s32 %s33, %s40
      %p124 = scmp.eq.s32.totalorder %s123, 0
      %s126 = sadd.s32 %s125, 1
      %s127 = scalar_select %p124, %s125, %s126
      %p130 = pneg %p124
      %p131 = scmp.eq.s32.totalorder %s25, 1
      %p132 = por %p130, %p131
      %p133 = scmp.ne.s32.totalorder %s125, %s128
      %p134 = scmp.eq.s32.totalorder %s25, 0
      %p135 = por %p133, %p134
      %p136 = scmp.ne.s32.totalorder %s125, %s128
      %p137 = scmp.eq.s32.totalorder %s30, 1
      %p138 = por %p136, %p137
      %p139 = scmp.ne.s32.totalorder %s128, %s129
      %p140 = scmp.eq.s32.totalorder %s30, 0
      %p141 = por %p139, %p140
      %p142 = scmp.ne.s32.totalorder %s128, %s129
      %p143 = scmp.eq.s32.totalorder %s31, 1
      %p144 = por %p142, %p143
      %p146 = scmp.ne.s32.totalorder %s129, %s145
      %p147 = scmp.eq.s32.totalorder %s31, 0
      %p148 = por %p146, %p147
      %s149 = ssub.s32 %s33, %s40
      %p150 = scmp.eq.s32.totalorder %s149, 0
      %s152 = sadd.s32 %s151, 1
      %s153 = scalar_select %p150, %s151, %s152
      %p156 = pneg %p150
      %p157 = scmp.eq.s32.totalorder %s25, 1
      %p158 = por %p156, %p157
      %p159 = scmp.ne.s32.totalorder %s151, %s154
      %p160 = scmp.eq.s32.totalorder %s25, 0
      %p161 = por %p159, %p160
      %p162 = scmp.ne.s32.totalorder %s151, %s154
      %p163 = scmp.eq.s32.totalorder %s30, 1
      %p164 = por %p162, %p163
      %p165 = scmp.ne.s32.totalorder %s154, %s155
      %p166 = scmp.eq.s32.totalorder %s30, 0
      %p167 = por %p165, %p166
      %p168 = scmp.ne.s32.totalorder %s154, %s155
      %p169 = scmp.eq.s32.totalorder %s31, 1
      %p170 = por %p168, %p169
      %p172 = scmp.ne.s32.totalorder %s155, %s171
      %p173 = scmp.eq.s32.totalorder %s31, 0
      %p174 = por %p172, %p173
      %s175 = ssub.s32 %s33, %s40
      %p176 = scmp.eq.s32.totalorder %s175, 0
      %s178 = sadd.s32 %s177, 1
      %s179 = scalar_select %p176, %s177, %s178
      %p182 = pneg %p176
      %p183 = scmp.eq.s32.totalorder %s25, 1
      %p184 = por %p182, %p183
      %p185 = scmp.ne.s32.totalorder %s177, %s180
      %p186 = scmp.eq.s32.totalorder %s25, 0
      %p187 = por %p185, %p186
      %p188 = scmp.ne.s32.totalorder %s177, %s180
      %p189 = scmp.eq.s32.totalorder %s30, 1
      %p190 = por %p188, %p189
      %p191 = scmp.ne.s32.totalorder %s180, %s181
      %p192 = scmp.eq.s32.totalorder %s30, 0
      %p193 = por %p191, %p192
      %p194 = scmp.ne.s32.totalorder %s180, %s181
      %p195 = scmp.eq.s32.totalorder %s31, 1
      %p196 = por %p194, %p195
      %p198 = scmp.ne.s32.totalorder %s181, %s197
      %p199 = scmp.eq.s32.totalorder %s31, 0
      %p200 = por %p198, %p199
      %s201 = ssub.s32 %s33, %s40
      %p202 = scmp.eq.s32.totalorder %s201, 0
      %s204 = sadd.s32 %s203, 1
      %s205 = scalar_select %p202, %s203, %s204
      %p208 = pneg %p202
      %p209 = scmp.eq.s32.totalorder %s25, 1
      %p210 = por %p208, %p209
      %p211 = scmp.ne.s32.totalorder %s203, %s206
      %p212 = scmp.eq.s32.totalorder %s25, 0
      %p213 = por %p211, %p212
      %p214 = scmp.ne.s32.totalorder %s203, %s206
      %p215 = scmp.eq.s32.totalorder %s30, 1
      %p216 = por %p214, %p215
      %p217 = scmp.ne.s32.totalorder %s206, %s207
      %p218 = scmp.eq.s32.totalorder %s30, 0
      %p219 = por %p217, %p218
      %p220 = scmp.ne.s32.totalorder %s206, %s207
      %p221 = scmp.eq.s32.totalorder %s31, 1
      %p222 = por %p220, %p221
      %p224 = scmp.ne.s32.totalorder %s207, %s223
      %p225 = scmp.eq.s32.totalorder %s31, 0
      %p226 = por %p224, %p225
      %s227 = ssub.s32 %s33, %s40
      %p228 = scmp.eq.s32.totalorder %s227, 0
      %s230 = sadd.s32 %s229, 1
      %s231 = scalar_select %p228, %s229, %s230
      %p234 = pneg %p228
      %p235 = scmp.eq.s32.totalorder %s25, 1
      %p236 = por %p234, %p235
      %p237 = scmp.ne.s32.totalorder %s229, %s232
      %p238 = scmp.eq.s32.totalorder %s25, 0
      %p239 = por %p237, %p238
      %p240 = scmp.ne.s32.totalorder %s229, %s232
      %p241 = scmp.eq.s32.totalorder %s30, 1
      %p242 = por %p240, %p241
      %p243 = scmp.ne.s32.totalorder %s232, %s233
      %p244 = scmp.eq.s32.totalorder %s30, 0
      %p245 = por %p243, %p244
      %p246 = scmp.ne.s32.totalorder %s232, %s233
      %p247 = scmp.eq.s32.totalorder %s31, 1
      %p248 = por %p246, %p247
      %p250 = scmp.ne.s32.totalorder %s233, %s249
      %p251 = scmp.eq.s32.totalorder %s31, 0
      %p252 = por %p250, %p251
      %s253 = ssub.s32 %s33, %s40
      %p254 = scmp.eq.s32.totalorder %s253, 0
      %s256 = sadd.s32 %s255, 1
      %s257 = scalar_select %p254, %s255, %s256
      %p260 = pneg %p254
      %p261 = scmp.eq.s32.totalorder %s25, 1
      %p262 = por %p260, %p261
      %p263 = scmp.ne.s32.totalorder %s255, %s258
      %p264 = scmp.eq.s32.totalorder %s25, 0
      %p265 = por %p263, %p264
      %p266 = scmp.ne.s32.totalorder %s255, %s258
      %p267 = scmp.eq.s32.totalorder %s30, 1
      %p268 = por %p266, %p267
      %p269 = scmp.ne.s32.totalorder %s258, %s259
      %p270 = scmp.eq.s32.totalorder %s30, 0
      %p271 = por %p269, %p270
      %p272 = scmp.ne.s32.totalorder %s258, %s259
      %p273 = scmp.eq.s32.totalorder %s31, 1
      %p274 = por %p272, %p273
      %p276 = scmp.ne.s32.totalorder %s259, %s275
      %p277 = scmp.eq.s32.totalorder %s31, 0
      %p278 = por %p276, %p277
      %s279 = ssub.s32 %s32, %s44
      %p280 = scmp.eq.s32.totalorder %s279, 0
      %s282 = sadd.s32 %s281, 1
      %s283 = scalar_select %p280, %s281, %s282
      %p286 = pneg %p280
      %p287 = scmp.eq.s32.totalorder %s25, 1
      %p288 = por %p286, %p287
      %p289 = scmp.ne.s32.totalorder %s281, %s284
      %p290 = scmp.eq.s32.totalorder %s25, 0
      %p291 = por %p289, %p290
      %p292 = scmp.ne.s32.totalorder %s281, %s284
      %p293 = scmp.eq.s32.totalorder %s30, 1
      %p294 = por %p292, %p293
      %p295 = scmp.ne.s32.totalorder %s284, %s285
      %p296 = scmp.eq.s32.totalorder %s30, 0
      %p297 = por %p295, %p296
      %p298 = scmp.ne.s32.totalorder %s284, %s285
      %p299 = scmp.eq.s32.totalorder %s31, 1
      %p300 = por %p298, %p299
      %p302 = scmp.ne.s32.totalorder %s285, %s301
      %p303 = scmp.eq.s32.totalorder %s31, 0
      %p304 = por %p302, %p303
      %s305 = ssub.s32 %s33, %s40
      %s306 = ssub.s32 %s32, %s44
      %s307 = sor.u32 %s305, %s306
      %p308 = scmp.eq.s32.totalorder %s307, 0
      %s310 = sadd.s32 %s309, 1
      %s311 = scalar_select %p308, %s309, %s310
      %p314 = pneg %p308
      %p315 = scmp.eq.s32.totalorder %s25, 1
      %p316 = por %p314, %p315
      %p317 = scmp.ne.s32.totalorder %s309, %s312
      %p318 = scmp.eq.s32.totalorder %s25, 0
      %p319 = por %p317, %p318
      %p320 = scmp.ne.s32.totalorder %s309, %s312
      %p321 = scmp.eq.s32.totalorder %s30, 1
      %p322 = por %p320, %p321
      %p323 = scmp.ne.s32.totalorder %s312, %s313
      %p324 = scmp.eq.s32.totalorder %s30, 0
      %p325 = por %p323, %p324
      %p326 = scmp.ne.s32.totalorder %s312, %s313
      %p327 = scmp.eq.s32.totalorder %s31, 1
      %p328 = por %p326, %p327
      %p330 = scmp.ne.s32.totalorder %s313, %s329
      %p331 = scmp.eq.s32.totalorder %s31, 0
      %p332 = por %p330, %p331
      %p333 = scmp.le.s32.totalorder 1, %s25
      %p334 = scmp.lt.s32.totalorder %s25, 3
      %p335 = pnand %p333, %p334
      %p336 = pneg %p335
      // Predicated region
      $region9: #{tpu_custom_call.1} parent=5 // pred_check
        _
      $region10: #{tpu_custom_call.1} parent=5 // pred_check_branch
        %338 = sbr.rel (%p335) target = $region12
      $region11: #{tpu_custom_call.1} parent=5 // pred_region
        %s339 = ssub.s32 %s25, 1
        // Predicated region
        $region13: #{tpu_custom_call.1} parent=11 // pred_check
          %p340 = pneg %p63
        $region14: #{tpu_custom_call.1} parent=11 // pred_check_branch
          %342 = sbr.rel (%p340) target = $region16
        $region15: #{tpu_custom_call.1} parent=11 // pred_region
          %s343 = smul.u32 2, %s34
          %s345 = ssub.s32 256, 256
          %346 = vsyncadd [#allocation3], %s345
          %s347 = smul.addr %s343, 128
          %s348 = scalar_lea.hbm %s0, %s347
          %s349 = sshll.u32 [#allocation2], 4
          %s350 = int_to_ptr.vmem [resolvable:$true] %s349
          %355 = dma.hbm_to_vmem [thread:$0]  %s348, 256, %s350, [#allocation3], 128, 128, 8
        $region16: #{tpu_custom_call.1} parent=11 // pred_fallthru
          _
      $region12: #{tpu_custom_call.1} parent=5 // pred_fallthru
        _
      %p356 = scmp.lt.s32.totalorder %s25, 2
      // Predicated region
      $region17: #{tpu_custom_call.1} parent=5 // pred_check
        %p357 = pneg %p356
      $region18: #{tpu_custom_call.1} parent=5 // pred_check_branch
        %359 = sbr.rel (%p357) target = $region20
      $region19: #{tpu_custom_call.1} parent=5 // pred_region
        // Predicated region
        $region21: #{tpu_custom_call.1} parent=19 // pred_check
          %p360 = pneg %p83
        $region22: #{tpu_custom_call.1} parent=19 // pred_check_branch
          %362 = sbr.rel (%p360) target = $region24
        $region23: #{tpu_custom_call.1} parent=19 // pred_region
          %p363 = scmp.lt.s32.totalorder %s33, 1
          %s364 = scalar_select %p363, %s33, 1
          %s365 = smul.addr %s364, 2
          %s366 = smul.addr %s365, 8
          %s367 = scalar_lea.vmem %s1, %s366
        $region24: #{tpu_custom_call.1} parent=19 // pred_fallthru
          _
        // Predicated region
        $region25: #{tpu_custom_call.1} parent=19 // pred_check
          %p368 = pneg %p109
        $region26: #{tpu_custom_call.1} parent=19 // pred_check_branch
          %370 = sbr.rel (%p368) target = $region28
        $region27: #{tpu_custom_call.1} parent=19 // pred_region
          %s371 = sand.u32 %s25, 1
          %s372 = scalar_lea.sflag [#allocation6], %s371
          %s373 = sand.u32 %s99, 1
          %s374 = scalar_lea.vmem [#allocation5], %s373
          %s376 = ssub.s32 16, 16
          %377 = vsyncadd %s372, %s376
          %s378 = smul.addr %s33, 16
          %s379 = scalar_lea.hbm %s2, %s378
          %s381 = sshll.u32 %s374, 4
          %s382 = int_to_ptr.vmem [resolvable:$true] %s381
          %384 = dma.hbm_to_vmem [thread:$0]  %s379, 16, %s382, %s372
        $region28: #{tpu_custom_call.1} parent=19 // pred_fallthru
          _
        // Predicated region
        $region29: #{tpu_custom_call.1} parent=19 // pred_check
          %p385 = pneg %p135
        $region30: #{tpu_custom_call.1} parent=19 // pred_check_branch
          %387 = sbr.rel (%p385) target = $region32
        $region31: #{tpu_custom_call.1} parent=19 // pred_region
          %p388 = scmp.lt.s32.totalorder %s33, 1
          %s389 = scalar_select %p388, %s33, 1
          %s390 = smul.addr %s389, 4
          %s391 = smul.addr %s390, 4
          %s392 = scalar_lea.vmem %s3, %s391
        $region32: #{tpu_custom_call.1} parent=19 // pred_fallthru
          _
        // Predicated region
        $region33: #{tpu_custom_call.1} parent=19 // pred_check
          %p393 = pneg %p161
        $region34: #{tpu_custom_call.1} parent=19 // pred_check_branch
          %395 = sbr.rel (%p393) target = $region36
        $region35: #{tpu_custom_call.1} parent=19 // pred_region
          %p396 = scmp.lt.s32.totalorder %s33, 1
          %s397 = scalar_select %p396, %s33, 1
          %s398 = smul.addr %s397, 4
          %s399 = smul.addr %s398, 4
          %s400 = scalar_lea.vmem %s4, %s399
        $region36: #{tpu_custom_call.1} parent=19 // pred_fallthru
          _
        // Predicated region
        $region37: #{tpu_custom_call.1} parent=19 // pred_check
          %p401 = pneg %p187
        $region38: #{tpu_custom_call.1} parent=19 // pred_check_branch
          %403 = sbr.rel (%p401) target = $region40
        $region39: #{tpu_custom_call.1} parent=19 // pred_region
          %p404 = scmp.lt.s32.totalorder %s33, 1
          %s405 = scalar_select %p404, %s33, 1
          %s406 = smul.addr %s405, 4
          %s407 = smul.addr %s406, 4
          %s408 = scalar_lea.vmem %s5, %s407
        $region40: #{tpu_custom_call.1} parent=19 // pred_fallthru
          _
        // Predicated region
        $region41: #{tpu_custom_call.1} parent=19 // pred_check
          %p409 = pneg %p213
        $region42: #{tpu_custom_call.1} parent=19 // pred_check_branch
          %411 = sbr.rel (%p409) target = $region44
        $region43: #{tpu_custom_call.1} parent=19 // pred_region
          %p412 = scmp.lt.s32.totalorder %s33, 1
          %s413 = scalar_select %p412, %s33, 1
          %s414 = smul.addr %s413, 4
          %s415 = smul.addr %s414, 4
          %s416 = scalar_lea.vmem %s6, %s415
        $region44: #{tpu_custom_call.1} parent=19 // pred_fallthru
          _
        // Predicated region
        $region45: #{tpu_custom_call.1} parent=19 // pred_check
          %p417 = pneg %p239
        $region46: #{tpu_custom_call.1} parent=19 // pred_check_branch
          %419 = sbr.rel (%p417) target = $region48
        $region47: #{tpu_custom_call.1} parent=19 // pred_region
          %s420 = sand.u32 %s25, 1
          %s421 = scalar_lea.sflag [#allocation6], %s420
          %s422 = sand.u32 %s229, 1
          %s423 = smul.addr %s422, 16
          %s424 = scalar_lea.vmem [#allocation7], %s423
          %s426 = ssub.s32 256, 256
          %427 = vsyncadd %s421, %s426
          %s428 = smul.addr %s33, 4
          %s429 = smul.addr %s428, 64
          %s430 = scalar_lea.hbm %s7, %s429
          %s431 = sshll.u32 %s424, 4
          %s432 = int_to_ptr.vmem [resolvable:$true] %s431
          %437 = dma.hbm_to_vmem [thread:$0]  %s430, 256, %s432, %s421, 64, 64, 4
        $region48: #{tpu_custom_call.1} parent=19 // pred_fallthru
          _
        // Predicated region
        $region49: #{tpu_custom_call.1} parent=19 // pred_check
          %p438 = pneg %p265
        $region50: #{tpu_custom_call.1} parent=19 // pred_check_branch
          %440 = sbr.rel (%p438) target = $region52
        $region51: #{tpu_custom_call.1} parent=19 // pred_region
          %p441 = scmp.lt.s32.totalorder %s33, 1
          %s442 = scalar_select %p441, %s33, 1
          %s443 = smul.addr %s442, 8
          %s444 = smul.addr %s443, 4
          %s445 = scalar_lea.vmem %s8, %s444
        $region52: #{tpu_custom_call.1} parent=19 // pred_fallthru
          _
      $region20: #{tpu_custom_call.1} parent=5 // pred_fallthru
        _
      %p446 = scmp.le.s32.totalorder 1, %s25
      %p447 = scmp.lt.s32.totalorder %s25, 3
      %p448 = pnand %p446, %p447
      %p449 = pneg %p448
      // Predicated region
      $region53: #{tpu_custom_call.1} parent=5 // pred_check
        _
      $region54: #{tpu_custom_call.1} parent=5 // pred_check_branch
        %451 = sbr.rel (%p448) target = $region56
      $region55: #{tpu_custom_call.1} parent=5 // pred_region
        %s452 = ssub.s32 %s25, 1
        // Predicated region
        $region57: #{tpu_custom_call.1} parent=55 // pred_check
          %p453 = pneg %p63
        $region58: #{tpu_custom_call.1} parent=55 // pred_check_branch
          %455 = sbr.rel (%p453) target = $region60
        $region59: #{tpu_custom_call.1} parent=55 // pred_region
          %456 = dma.done [#allocation3], 256
        $region60: #{tpu_custom_call.1} parent=55 // pred_fallthru
          _
        %s457 = sand.u32 %s30, 1
        %s458 = scalar_lea.sflag [#allocation6], %s457
        %s459 = sand.u32 %s102, 1
        %s460 = scalar_lea.vmem [#allocation5], %s459
        // Predicated region
        $region61: #{tpu_custom_call.1} parent=55 // pred_check
          %p461 = pneg %p115
        $region62: #{tpu_custom_call.1} parent=55 // pred_check_branch
          %463 = sbr.rel (%p461) target = $region64
        $region63: #{tpu_custom_call.1} parent=55 // pred_region
          %464 = dma.done %s458, 16
        $region64: #{tpu_custom_call.1} parent=55 // pred_fallthru
          _
        %s465 = sand.u32 %s30, 1
        %s466 = scalar_lea.sflag [#allocation6], %s465
        %s467 = sand.u32 %s232, 1
        %s468 = smul.addr %s467, 16
        %s469 = scalar_lea.vmem [#allocation7], %s468
        // Predicated region
        $region65: #{tpu_custom_call.1} parent=55 // pred_check
          %p470 = pneg %p245
        $region66: #{tpu_custom_call.1} parent=55 // pred_check_branch
          %472 = sbr.rel (%p470) target = $region68
        $region67: #{tpu_custom_call.1} parent=55 // pred_region
          %473 = dma.done %s466, 256
        $region68: #{tpu_custom_call.1} parent=55 // pred_fallthru
          _
        %p474 = pneg %p63
        %p475 = pneg %p60
        %p476 = scmp.lt.s32.totalorder %s35, 1
        %s477 = scalar_select %p476, %s35, 1
        %s478 = smul.addr %s477, 2
        %s479 = smul.addr %s478, 8
        %s480 = scalar_lea.vmem %s1, %s479
        %p481 = pneg %p89
        %p482 = pneg %p86
        %s483 = sand.u32 %s30, 1
        %s484 = scalar_lea.sflag [#allocation6], %s483
        %s485 = sand.u32 %s102, 1
        %s486 = scalar_lea.vmem [#allocation5], %s485
        %p487 = pneg %p115
        %p488 = pneg %p112
        %p489 = scmp.lt.s32.totalorder %s35, 1
        %s490 = scalar_select %p489, %s35, 1
        %s491 = smul.addr %s490, 4
        %s492 = smul.addr %s491, 4
        %s493 = scalar_lea.vmem %s3, %s492
        %p494 = pneg %p141
        %p495 = pneg %p138
        %p496 = scmp.lt.s32.totalorder %s35, 1
        %s497 = scalar_select %p496, %s35, 1
        %s498 = smul.addr %s497, 4
        %s499 = smul.addr %s498, 4
        %s500 = scalar_lea.vmem %s4, %s499
        %p501 = pneg %p167
        %p502 = pneg %p164
        %p503 = scmp.lt.s32.totalorder %s35, 1
        %s504 = scalar_select %p503, %s35, 1
        %s505 = smul.addr %s504, 4
        %s506 = smul.addr %s505, 4
        %s507 = scalar_lea.vmem %s5, %s506
        %p508 = pneg %p193
        %p509 = pneg %p190
        %p510 = scmp.lt.s32.totalorder %s35, 1
        %s511 = scalar_select %p510, %s35, 1
        %s512 = smul.addr %s511, 4
        %s513 = smul.addr %s512, 4
        %s514 = scalar_lea.vmem %s6, %s513
        %p515 = pneg %p219
        %p516 = pneg %p216
        %s517 = sand.u32 %s30, 1
        %s518 = scalar_lea.sflag [#allocation6], %s517
        %s519 = sand.u32 %s232, 1
        %s520 = smul.addr %s519, 16
        %s521 = scalar_lea.vmem [#allocation7], %s520
        %p522 = pneg %p245
        %p523 = pneg %p242
        %p524 = scmp.lt.s32.totalorder %s35, 1
        %s525 = scalar_select %p524, %s35, 1
        %s526 = smul.addr %s525, 8
        %s527 = smul.addr %s526, 4
        %s528 = scalar_lea.vmem %s8, %s527
        %p529 = pneg %p271
        %p530 = pneg %p268
        %p531 = pneg %p297
        %p532 = pneg %p294
        %p533 = pneg %p325
        %p534 = pneg %p322
        %s535 = sand.u32 %s312, 1
        %s536 = scalar_lea.sflag [#allocation10], %s535
        %s537 = sand.u32 %s312, 1
        %s538 = smul.addr %s537, 16
        %s539 = scalar_lea.vmem [#allocation9], %s538
        %s540 = smul.u32 2, %s34
        %p541 = scmp.lt.s32.totalorder %s35, 1
        %s542 = scalar_select %p541, %s35, 1
        %s543 = smul.addr %s542, 2
        %s544 = smul.addr %s543, 8
        %s545 = scalar_lea.vmem %s1, %s544
        %p546 = scmp.lt.s32.totalorder %s35, 1
        %s547 = scalar_select %p546, %s35, 1
        %s548 = smul.addr %s547, 4
        %s549 = smul.addr %s548, 4
        %s550 = scalar_lea.vmem %s3, %s549
        %p551 = scmp.lt.s32.totalorder %s35, 1
        %s552 = scalar_select %p551, %s35, 1
        %s553 = smul.addr %s552, 4
        %s554 = smul.addr %s553, 4
        %s555 = scalar_lea.vmem %s4, %s554
        %p556 = scmp.lt.s32.totalorder %s35, 1
        %s557 = scalar_select %p556, %s35, 1
        %s558 = smul.addr %s557, 4
        %s559 = smul.addr %s558, 4
        %s560 = scalar_lea.vmem %s5, %s559
        %p561 = scmp.lt.s32.totalorder %s35, 1
        %s562 = scalar_select %p561, %s35, 1
        %s563 = smul.addr %s562, 4
        %s564 = smul.addr %s563, 4
        %s565 = scalar_lea.vmem %s6, %s564
        %p566 = scmp.lt.s32.totalorder %s35, 1
        %s567 = scalar_select %p566, %s35, 1
        %s568 = smul.addr %s567, 8
        %s569 = smul.addr %s568, 4
        %s570 = scalar_lea.vmem %s8, %s569
        %s571 = smul.u32 2, %s34
        %s572 = smul.u32 2, %s34
        %p574 = scmp.eq.s32.totalorder %s35, 0
        // Predicated region
        $region69: #{tpu_custom_call.1} parent=55 // pred_check
          %p575 = pneg %p574
        $region70: #{tpu_custom_call.1} parent=55 // pred_check_branch
          %577 = sbr.rel (%p575) target = $region72
        $region71: #{tpu_custom_call.1} parent=55 // pred_region
          %v578 = vld [vmem:[#allocation2] sm:$0xff]
          %v579 = vld [vmem:[#allocation2 + $0x8] sm:$0xff]
          %vm580 = vcmask 261120
          %581 = vst.msk [vmem:[#allocation8] sm:$0xff] %vm580, %v578
          %582 = vst.msk [vmem:[#allocation8 + $0x8] sm:$0xff] %vm580, %v579
        $region72: #{tpu_custom_call.1} parent=55 // pred_fallthru
          _
        %v583 = vld [vmem:[%s545] sm:$0xff]
        %v584 = vld [vmem:[%s545 + $0x8] sm:$0x1]
        %v585 = vld [vmem:[#allocation8] sm:$0xff]
        %v586 = vld [vmem:[#allocation8 + $0x8] sm:$0xff]
        %vm587 = vcmask 261120
        %v588 = vsel %vm587, %v585, 0.0
        %589 = vadd.xlane.f32.xlu0 %v588
        %v590 = vpop.xlane.xlu0 %589
        %v591 = vsel %vm587, %v586, 0.0
        %592 = vadd.xlane.f32.xlu0 %v591
        %v593 = vpop.xlane.xlu0 %592
        %v594 = vrcp.pop 32.0
        %v595 = vmul.f32 %v590, %v594
        %v596 = vmul.f32 %v593, %v594
        %v597 = vsub.f32 %v585, %v595
        %v598 = vsub.f32 %v586, %v596
        %v599 = vmul.f32 %v597, %v597
        %v600 = vmul.f32 %v598, %v598
        %v601 = vsel %vm587, %v599, 0.0
        %602 = vadd.xlane.f32.xlu0 %v601
        %v603 = vpop.xlane.xlu0 %602
        %v604 = vsel %vm587, %v600, 0.0
        %605 = vadd.xlane.f32.xlu0 %v604
        %v606 = vpop.xlane.xlu0 %605
        %v607 = vmul.f32 %v603, %v594
        %v608 = vmul.f32 %v606, %v594
        %v609 = vadd.f32 %v607, 1e-05
        %v610 = vadd.f32 %v608, 1e-05
        %v611 = vrsqrt.pop %v609
        %v612 = vrsqrt.pop %v610
        %v613 = vmul.f32 %v597, %v611
        %v614 = vmul.f32 %v598, %v612
        %v615 = vlaneseq
        %v616 = vshrl.u32 %v615, 7
        %v617 = vsub.s32 0, %v616
        %v618 = vrot.slane %v583, %v617
        %v619 = vmul.f32 %v613, %v618
        %v620 = vmul.f32 %v614, %v618
        %v621 = vlaneseq
        %v622 = vshrl.u32 %v621, 7
        %v623 = vsub.s32 1, %v622
        %v624 = vrot.slane %v583, %v623
        %v625 = vadd.f32 %v619, %v624
        %v626 = vadd.f32 %v620, %v624
        %v627 = vld [vmem:[%s550] sm:$0xf]
        %v628 = vld [vmem:[%s550 + $0x4] sm:$0xf]
        %v629 = vld [vmem:[%s550 + $0x8] sm:$0xf]
        %v630 = vld [vmem:[%s550 + $0xc] sm:$0xf]
        %v631 = vpack.c.bf16 %v626, %v625
        %v632 = vlaneseq
        %v633 = vshrl.u32 %v632, 7
        %v634 = vsub.s32 2, %v633
        %v635 = vrot.slane %v583, %v634
        %v640 = vunpack.c.l.b16 %v627
        %v641 = vunpack.c.l.b16 %v628
        %v642 = vunpack.c.l.b16 %v629
        %v643 = vunpack.c.l.b16 %v630
        %v644 = vpack.c.b16 %v641, %v640
        %v645 = vpack.c.b16 %v643, %v642
        %v649 = vsel %vm587, %v631, 0
        %651 = vmatprep.subr.bf16.mxu0 0
        %652 = vmatpush1.bf16.msra.mxu0 %v644
        %653 = vmatprep.subr.bf16.mxu0 0
        %654 = vmatpush1.bf16.msra.mxu0 %v645
        %655 = vmatprep.subr.bf16.mxu0 0
        %656 = vmatpush1.bf16.msra.mxu0 0
        %657 = vmatprep.subr.bf16.mxu0 0
        %658 = vmatpush1.bf16.msra.mxu0 0
        %659 = vmatprep.subr.bf16.mxu0 0
        %660 = vmatpush1.bf16.msra.mxu0 0
        %661 = vmatprep.subr.bf16.mxu0 0
        %662 = vmatpush1.bf16.msra.mxu0 0
        %663 = vmatprep.subr.bf16.mxu0 0
        %664 = vmatpush1.bf16.msra.mxu0 0
        %665 = vmatprep.subr.bf16.mxu0 0
        %666 = vmatpush1.bf16.msra.mxu0 0
        %667 = vmatprep.subr.bf16.mxu0 0
        %668 = vmatpush1.bf16.msra.mxu0 0
        %669 = vmatprep.subr.bf16.mxu0 0
        %670 = vmatpush1.bf16.msra.mxu0 0
        %671 = vmatprep.subr.bf16.mxu0 0
        %672 = vmatpush1.bf16.msra.mxu0 0
        %673 = vmatprep.subr.bf16.mxu0 0
        %674 = vmatpush1.bf16.msra.mxu0 0
        %675 = vmatprep.subr.bf16.mxu0 0
        %676 = vmatpush1.bf16.msra.mxu0 0
        %677 = vmatprep.subr.bf16.mxu0 0
        %678 = vmatpush1.bf16.msra.mxu0 0
        %679 = vmatprep.subr.bf16.mxu0 0
        %680 = vmatpush1.bf16.msra.mxu0 0
        %681 = vmatprep.subr.bf16.mxu0 0
        %682 = vmatpush1.bf16.msra.mxu0 0
        %683 = vmatprep.mubr.bf16.mxu0 0
        %684 = vmatmul.mubr.bf16.gmra.mrb[0].mxu0 %v649
        %v685 = vpop.f32.mrb[0].mxu0
        %v686 = vadd.f32 %v635, %v685
        %v687 = vpop.f32.mrb[0].mxu0
        %v688 = vpop.f32.mrb[0].mxu0
        %v689 = vadd.f32 %v635, %v688
        %v690 = vpop.f32.mrb[0].mxu0
        %691 = vdwg.mxu0
        %v692 = vld [vmem:[%s555] sm:$0xf]
        %v693 = vld [vmem:[%s555 + $0x4] sm:$0xf]
        %v694 = vld [vmem:[%s555 + $0x8] sm:$0xf]
        %v695 = vld [vmem:[%s555 + $0xc] sm:$0xf]
        %v696 = vlaneseq
        %v697 = vshrl.u32 %v696, 7
        %v698 = vsub.s32 3, %v697
        %v699 = vrot.slane %v583, %v698
        %v704 = vunpack.c.l.b16 %v692
        %v705 = vunpack.c.l.b16 %v693
        %v706 = vunpack.c.l.b16 %v694
        %v707 = vunpack.c.l.b16 %v695
        %v708 = vpack.c.b16 %v705, %v704
        %v709 = vpack.c.b16 %v707, %v706
        %712 = vmatprep.subr.bf16.mxu0 0
        %713 = vmatpush1.bf16.msra.mxu0 %v708
        %714 = vmatprep.subr.bf16.mxu0 0
        %715 = vmatpush1.bf16.msra.mxu0 %v709
        %716 = vmatprep.subr.bf16.mxu0 0
        %717 = vmatpush1.bf16.msra.mxu0 0
        %718 = vmatprep.subr.bf16.mxu0 0
        %719 = vmatpush1.bf16.msra.mxu0 0
        %720 = vmatprep.subr.bf16.mxu0 0
        %721 = vmatpush1.bf16.msra.mxu0 0
        %722 = vmatprep.subr.bf16.mxu0 0
        %723 = vmatpush1.bf16.msra.mxu0 0
        %724 = vmatprep.subr.bf16.mxu0 0
        %725 = vmatpush1.bf16.msra.mxu0 0
        %726 = vmatprep.subr.bf16.mxu0 0
        %727 = vmatpush1.bf16.msra.mxu0 0
        %728 = vmatprep.subr.bf16.mxu0 0
        %729 = vmatpush1.bf16.msra.mxu0 0
        %730 = vmatprep.subr.bf16.mxu0 0
        %731 = vmatpush1.bf16.msra.mxu0 0
        %732 = vmatprep.subr.bf16.mxu0 0
        %733 = vmatpush1.bf16.msra.mxu0 0
        %734 = vmatprep.subr.bf16.mxu0 0
        %735 = vmatpush1.bf16.msra.mxu0 0
        %736 = vmatprep.subr.bf16.mxu0 0
        %737 = vmatpush1.bf16.msra.mxu0 0
        %738 = vmatprep.subr.bf16.mxu0 0
        %739 = vmatpush1.bf16.msra.mxu0 0
        %740 = vmatprep.subr.bf16.mxu0 0
        %741 = vmatpush1.bf16.msra.mxu0 0
        %742 = vmatprep.subr.bf16.mxu0 0
        %743 = vmatpush1.bf16.msra.mxu0 0
        %744 = vmatprep.mubr.bf16.mxu0 0
        %745 = vmatmul.mubr.bf16.gmra.mrb[0].mxu0 %v649
        %v746 = vpop.f32.mrb[0].mxu0
        %v747 = vadd.f32 %v699, %v746
        %v748 = vpop.f32.mrb[0].mxu0
        %v749 = vpop.f32.mrb[0].mxu0
        %v750 = vadd.f32 %v699, %v749
        %v751 = vpop.f32.mrb[0].mxu0
        %752 = vdwg.mxu0
        %v753 = vld [vmem:[%s560] sm:$0xf]
        %v754 = vld [vmem:[%s560 + $0x4] sm:$0xf]
        %v755 = vld [vmem:[%s560 + $0x8] sm:$0xf]
        %v756 = vld [vmem:[%s560 + $0xc] sm:$0xf]
        %v757 = vlaneseq
        %v758 = vshrl.u32 %v757, 7
        %v759 = vsub.s32 4, %v758
        %v760 = vrot.slane %v583, %v759
        %v765 = vunpack.c.l.b16 %v753
        %v766 = vunpack.c.l.b16 %v754
        %v767 = vunpack.c.l.b16 %v755
        %v768 = vunpack.c.l.b16 %v756
        %v769 = vpack.c.b16 %v766, %v765
        %v770 = vpack.c.b16 %v768, %v767
        %773 = vmatprep.subr.bf16.mxu0 0
        %774 = vmatpush1.bf16.msra.mxu0 %v769
        %775 = vmatprep.subr.bf16.mxu0 0
        %776 = vmatpush1.bf16.msra.mxu0 %v770
        %777 = vmatprep.subr.bf16.mxu0 0
        %778 = vmatpush1.bf16.msra.mxu0 0
        %779 = vmatprep.subr.bf16.mxu0 0
        %780 = vmatpush1.bf16.msra.mxu0 0
        %781 = vmatprep.subr.bf16.mxu0 0
        %782 = vmatpush1.bf16.msra.mxu0 0
        %783 = vmatprep.subr.bf16.mxu0 0
        %784 = vmatpush1.bf16.msra.mxu0 0
        %785 = vmatprep.subr.bf16.mxu0 0
        %786 = vmatpush1.bf16.msra.mxu0 0
        %787 = vmatprep.subr.bf16.mxu0 0
        %788 = vmatpush1.bf16.msra.mxu0 0
        %789 = vmatprep.subr.bf16.mxu0 0
        %790 = vmatpush1.bf16.msra.mxu0 0
        %791 = vmatprep.subr.bf16.mxu0 0
        %792 = vmatpush1.bf16.msra.mxu0 0
        %793 = vmatprep.subr.bf16.mxu0 0
        %794 = vmatpush1.bf16.msra.mxu0 0
        %795 = vmatprep.subr.bf16.mxu0 0
        %796 = vmatpush1.bf16.msra.mxu0 0
        %797 = vmatprep.subr.bf16.mxu0 0
        %798 = vmatpush1.bf16.msra.mxu0 0
        %799 = vmatprep.subr.bf16.mxu0 0
        %800 = vmatpush1.bf16.msra.mxu0 0
        %801 = vmatprep.subr.bf16.mxu0 0
        %802 = vmatpush1.bf16.msra.mxu0 0
        %803 = vmatprep.subr.bf16.mxu0 0
        %804 = vmatpush1.bf16.msra.mxu0 0
        %805 = vmatprep.mubr.bf16.mxu0 0
        %806 = vmatmul.mubr.bf16.gmra.mrb[0].mxu0 %v649
        %v807 = vpop.f32.mrb[0].mxu0
        %v808 = vadd.f32 %v760, %v807
        %v809 = vpop.f32.mrb[0].mxu0
        %v810 = vpop.f32.mrb[0].mxu0
        %v811 = vadd.f32 %v760, %v810
        %v812 = vpop.f32.mrb[0].mxu0
        %813 = vdwg.mxu0
        %v814 = vpack.c.bf16 %v686, %v686
        %v815 = vpack.c.bf16 %v689, %v689
        %v816 = vpack.c.bf16 %v747, %v747
        %v817 = vpack.c.bf16 %v750, %v750
        %v818 = vpack.c.bf16 %v808, %v808
        %v819 = vpack.c.bf16 %v811, %v811
        %vm820 = vcmask 64512
        %v822 = vsel %vm820, %v814, 0
        %v825 = vsel %vm820, %v816, 0
        %827 = vmatprep.subr.bf16.mxu0 0
        %828 = vmatpush1.bf16.xpose.msra.mxu0 %v825
        %829 = vmatprep.subr.bf16.mxu0 0
        %830 = vmatpush1.bf16.xpose.msra.mxu0 0
        %831 = vmatprep.subr.bf16.mxu0 0
        %832 = vmatpush1.bf16.xpose.msra.mxu0 0
        %833 = vmatprep.subr.bf16.mxu0 0
        %834 = vmatpush1.bf16.xpose.msra.mxu0 0
        %835 = vmatprep.subr.bf16.mxu0 0
        %836 = vmatpush1.bf16.xpose.msra.mxu0 0
        %837 = vmatprep.subr.bf16.mxu0 0
        %838 = vmatpush1.bf16.xpose.msra.mxu0 0
        %839 = vmatprep.subr.bf16.mxu0 0
        %840 = vmatpush1.bf16.xpose.msra.mxu0 0
        %841 = vmatprep.subr.bf16.mxu0 0
        %842 = vmatpush1.bf16.xpose.msra.mxu0 0
        %843 = vmatprep.subr.bf16.mxu0 0
        %844 = vmatpush1.bf16.xpose.msra.mxu0 0
        %845 = vmatprep.subr.bf16.mxu0 0
        %846 = vmatpush1.bf16.xpose.msra.mxu0 0
        %847 = vmatprep.subr.bf16.mxu0 0
        %848 = vmatpush1.bf16.xpose.msra.mxu0 0
        %849 = vmatprep.subr.bf16.mxu0 0
        %850 = vmatpush1.bf16.xpose.msra.mxu0 0
        %851 = vmatprep.subr.bf16.mxu0 0
        %852 = vmatpush1.bf16.xpose.msra.mxu0 0
        %853 = vmatprep.subr.bf16.mxu0 0
        %854 = vmatpush1.bf16.xpose.msra.mxu0 0
        %855 = vmatprep.subr.bf16.mxu0 0
        %856 = vmatpush1.bf16.xpose.msra.mxu0 0
        %857 = vmatprep.subr.bf16.mxu0 0
        %858 = vmatpush1.bf16.xpose.msra.mxu0 0
        %859 = vmatprep.mubr.bf16.mxu0 0
        %860 = vmatmul.mubr.bf16.gmra.mrb[0].mxu0 %v822
        %v861 = vpop.f32.mrb[0].mxu0
        %v862 = vadd.f32 0.0, %v861
        %v863 = vpop.f32.mrb[0].mxu0
        %v864 = vpop.f32.mrb[0].mxu0
        %v865 = vpop.f32.mrb[0].mxu0
        %866 = vdwg.mxu0
        %v868 = vsel %vm820, %v815, 0
        %v871 = vsel %vm820, %v817, 0
        %873 = vmatprep.subr.bf16.mxu0 0
        %874 = vmatpush1.bf16.xpose.msra.mxu0 %v871
        %875 = vmatprep.subr.bf16.mxu0 0
        %876 = vmatpush1.bf16.xpose.msra.mxu0 0
        %877 = vmatprep.subr.bf16.mxu0 0
        %878 = vmatpush1.bf16.xpose.msra.mxu0 0
        %879 = vmatprep.subr.bf16.mxu0 0
        %880 = vmatpush1.bf16.xpose.msra.mxu0 0
        %881 = vmatprep.subr.bf16.mxu0 0
        %882 = vmatpush1.bf16.xpose.msra.mxu0 0
        %883 = vmatprep.subr.bf16.mxu0 0
        %884 = vmatpush1.bf16.xpose.msra.mxu0 0
        %885 = vmatprep.subr.bf16.mxu0 0
        %886 = vmatpush1.bf16.xpose.msra.mxu0 0
        %887 = vmatprep.subr.bf16.mxu0 0
        %888 = vmatpush1.bf16.xpose.msra.mxu0 0
        %889 = vmatprep.subr.bf16.mxu0 0
        %890 = vmatpush1.bf16.xpose.msra.mxu0 0
        %891 = vmatprep.subr.bf16.mxu0 0
        %892 = vmatpush1.bf16.xpose.msra.mxu0 0
        %893 = vmatprep.subr.bf16.mxu0 0
        %894 = vmatpush1.bf16.xpose.msra.mxu0 0
        %895 = vmatprep.subr.bf16.mxu0 0
        %896 = vmatpush1.bf16.xpose.msra.mxu0 0
        %897 = vmatprep.subr.bf16.mxu0 0
        %898 = vmatpush1.bf16.xpose.msra.mxu0 0
        %899 = vmatprep.subr.bf16.mxu0 0
        %900 = vmatpush1.bf16.xpose.msra.mxu0 0
        %901 = vmatprep.subr.bf16.mxu0 0
        %902 = vmatpush1.bf16.xpose.msra.mxu0 0
        %903 = vmatprep.subr.bf16.mxu0 0
        %904 = vmatpush1.bf16.xpose.msra.mxu0 0
        %905 = vmatprep.mubr.bf16.mxu0 0
        %906 = vmatmul.mubr.bf16.gmra.mrb[0].mxu0 %v868
        %v907 = vpop.f32.mrb[0].mxu0
        %v908 = vadd.f32 0.0, %v907
        %v909 = vpop.f32.mrb[0].mxu0
        %v910 = vpop.f32.mrb[0].mxu0
        %v911 = vpop.f32.mrb[0].mxu0
        %912 = vdwg.mxu0
        %v913 = vsel %vm820, %v862, -inf
        %914 = vmax.xlane.f32.xlu0 %v913
        %v915 = vpop.xlane.xlu0 %914
        %v916 = vsel %vm820, %v908, -inf
        %917 = vmax.xlane.f32.xlu0 %v916
        %v918 = vpop.xlane.xlu0 %917
        %v919 = vsub.f32 %v862, %v915
        %v920 = vsub.f32 %v908, %v918
        %v921 = vmul.f32 %v919, 1.442695
        %v922 = vpow.pop %v921
        %v923 = vmul.f32 %v920, 1.442695
        %v924 = vpow.pop %v923
        %v925 = vsel %vm820, %v922, 0.0
        %926 = vadd.xlane.f32.xlu0 %v925
        %v927 = vpop.xlane.xlu0 %926
        %v928 = vsel %vm820, %v924, 0.0
        %929 = vadd.xlane.f32.xlu0 %v928
        %v930 = vpop.xlane.xlu0 %929
        %v931 = vrcp.pop %v927
        %v932 = vrcp.pop %v930
        %v933 = vmul.f32 %v922, %v931
        %v934 = vmul.f32 %v924, %v932
        %v935 = vadd.f32 %v933, 0.0
        %v936 = vadd.f32 %v934, 0.0
        %v937 = vpack.c.bf16 %v933, %v933
        %v938 = vpack.c.bf16 %v934, %v934
        %v940 = vsel %vm820, %v937, 0
        %vm942 = vcmask 1043456
        %v944 = vsel %vm942, %v818, 0
        %946 = vmatprep.subr.bf16.mxu0 0
        %947 = vmatpush1.bf16.msra.mxu0 %v944
        %948 = vmatprep.subr.bf16.mxu0 0
        %949 = vmatpush1.bf16.msra.mxu0 0
        %950 = vmatprep.subr.bf16.mxu0 0
        %951 = vmatpush1.bf16.msra.mxu0 0
        %952 = vmatprep.subr.bf16.mxu0 0
        %953 = vmatpush1.bf16.msra.mxu0 0
        %954 = vmatprep.subr.bf16.mxu0 0
        %955 = vmatpush1.bf16.msra.mxu0 0
        %956 = vmatprep.subr.bf16.mxu0 0
        %957 = vmatpush1.bf16.msra.mxu0 0
        %958 = vmatprep.subr.bf16.mxu0 0
        %959 = vmatpush1.bf16.msra.mxu0 0
        %960 = vmatprep.subr.bf16.mxu0 0
        %961 = vmatpush1.bf16.msra.mxu0 0
        %962 = vmatprep.subr.bf16.mxu0 0
        %963 = vmatpush1.bf16.msra.mxu0 0
        %964 = vmatprep.subr.bf16.mxu0 0
        %965 = vmatpush1.bf16.msra.mxu0 0
        %966 = vmatprep.subr.bf16.mxu0 0
        %967 = vmatpush1.bf16.msra.mxu0 0
        %968 = vmatprep.subr.bf16.mxu0 0
        %969 = vmatpush1.bf16.msra.mxu0 0
        %970 = vmatprep.subr.bf16.mxu0 0
        %971 = vmatpush1.bf16.msra.mxu0 0
        %972 = vmatprep.subr.bf16.mxu0 0
        %973 = vmatpush1.bf16.msra.mxu0 0
        %974 = vmatprep.subr.bf16.mxu0 0
        %975 = vmatpush1.bf16.msra.mxu0 0
        %976 = vmatprep.subr.bf16.mxu0 0
        %977 = vmatpush1.bf16.msra.mxu0 0
        %978 = vmatprep.mubr.bf16.mxu0 0
        %979 = vmatmul.mubr.bf16.gmra.mrb[0].mxu0 %v940
        %v980 = vpop.f32.mrb[0].mxu0
        %v981 = vadd.f32 0.0, %v980
        %v982 = vpop.f32.mrb[0].mxu0
        %v983 = vpop.f32.mrb[0].mxu0
        %v984 = vpop.f32.mrb[0].mxu0
        %985 = vdwg.mxu0
        %v987 = vsel %vm820, %v938, 0
        %v990 = vsel %vm942, %v819, 0
        %992 = vmatprep.subr.bf16.mxu0 0
        %993 = vmatpush1.bf16.msra.mxu0 %v990
        %994 = vmatprep.subr.bf16.mxu0 0
        %995 = vmatpush1.bf16.msra.mxu0 0
        %996 = vmatprep.subr.bf16.mxu0 0
        %997 = vmatpush1.bf16.msra.mxu0 0
        %998 = vmatprep.subr.bf16.mxu0 0
        %999 = vmatpush1.bf16.msra.mxu0 0
        %1000 = vmatprep.subr.bf16.mxu0 0
        %1001 = vmatpush1.bf16.msra.mxu0 0
        %1002 = vmatprep.subr.bf16.mxu0 0
        %1003 = vmatpush1.bf16.msra.mxu0 0
        %1004 = vmatprep.subr.bf16.mxu0 0
        %1005 = vmatpush1.bf16.msra.mxu0 0
        %1006 = vmatprep.subr.bf16.mxu0 0
        %1007 = vmatpush1.bf16.msra.mxu0 0
        %1008 = vmatprep.subr.bf16.mxu0 0
        %1009 = vmatpush1.bf16.msra.mxu0 0
        %1010 = vmatprep.subr.bf16.mxu0 0
        %1011 = vmatpush1.bf16.msra.mxu0 0
        %1012 = vmatprep.subr.bf16.mxu0 0
        %1013 = vmatpush1.bf16.msra.mxu0 0
        %1014 = vmatprep.subr.bf16.mxu0 0
        %1015 = vmatpush1.bf16.msra.mxu0 0
        %1016 = vmatprep.subr.bf16.mxu0 0
        %1017 = vmatpush1.bf16.msra.mxu0 0
        %1018 = vmatprep.subr.bf16.mxu0 0
        %1019 = vmatpush1.bf16.msra.mxu0 0
        %1020 = vmatprep.subr.bf16.mxu0 0
        %1021 = vmatpush1.bf16.msra.mxu0 0
        %1022 = vmatprep.subr.bf16.mxu0 0
        %1023 = vmatpush1.bf16.msra.mxu0 0
        %1024 = vmatprep.mubr.bf16.mxu0 0
        %1025 = vmatmul.mubr.bf16.gmra.mrb[0].mxu0 %v987
        %v1026 = vpop.f32.mrb[0].mxu0
        %v1027 = vadd.f32 0.0, %v1026
        %v1028 = vpop.f32.mrb[0].mxu0
        %v1029 = vpop.f32.mrb[0].mxu0
        %v1030 = vpop.f32.mrb[0].mxu0
        %1031 = vdwg.mxu0
        %v1032 = vpack.c.bf16 %v1027, %v981
        %v1033 = vld [vmem:[%s565] sm:$0xf]
        %1035 = vrot.lane.b32.xlu0 %v814, 120
        %v1036 = vpop.permute.xlu0 %1035
        %1038 = vrot.lane.b32.xlu0 %v816, 120
        %v1039 = vpop.permute.xlu0 %1038
        %v1041 = vsel %vm820, %v1036, 0
        %v1044 = vsel %vm820, %v1039, 0
        %1046 = vmatprep.subr.bf16.mxu0 0
        %1047 = vmatpush1.bf16.xpose.msra.mxu0 %v1044
        %1048 = vmatprep.subr.bf16.mxu0 0
        %1049 = vmatpush1.bf16.xpose.msra.mxu0 0
        %1050 = vmatprep.subr.bf16.mxu0 0
        %1051 = vmatpush1.bf16.xpose.msra.mxu0 0
        %1052 = vmatprep.subr.bf16.mxu0 0
        %1053 = vmatpush1.bf16.xpose.msra.mxu0 0
        %1054 = vmatprep.subr.bf16.mxu0 0
        %1055 = vmatpush1.bf16.xpose.msra.mxu0 0
        %1056 = vmatprep.subr.bf16.mxu0 0
        %1057 = vmatpush1.bf16.xpose.msra.mxu0 0
        %1058 = vmatprep.subr.bf16.mxu0 0
        %1059 = vmatpush1.bf16.xpose.msra.mxu0 0
        %1060 = vmatprep.subr.bf16.mxu0 0
        %1061 = vmatpush1.bf16.xpose.msra.mxu0 0
        %1062 = vmatprep.subr.bf16.mxu0 0
        %1063 = vmatpush1.bf16.xpose.msra.mxu0 0
        %1064 = vmatprep.subr.bf16.mxu0 0
        %1065 = vmatpush1.bf16.xpose.msra.mxu0 0
        %1066 = vmatprep.subr.bf16.mxu0 0
        %1067 = vmatpush1.bf16.xpose.msra.mxu0 0
        %1068 = vmatprep.subr.bf16.mxu0 0
        %1069 = vmatpush1.bf16.xpose.msra.mxu0 0
        %1070 = vmatprep.subr.bf16.mxu0 0
        %1071 = vmatpush1.bf16.xpose.msra.mxu0 0
        %1072 = vmatprep.subr.bf16.mxu0 0
        %1073 = vmatpush1.bf16.xpose.msra.mxu0 0
        %1074 = vmatprep.subr.bf16.mxu0 0
        %1075 = vmatpush1.bf16.xpose.msra.mxu0 0
        %1076 = vmatprep.subr.bf16.mxu0 0
        %1077 = vmatpush1.bf16.xpose.msra.mxu0 0
        %1078 = vmatprep.mubr.bf16.mxu0 0
        %1079 = vmatmul.mubr.bf16.gmra.mrb[0].mxu0 %v1041
        %v1080 = vpop.f32.mrb[0].mxu0
        %v1081 = vadd.f32 0.0, %v1080
        %v1082 = vpop.f32.mrb[0].mxu0
        %v1083 = vpop.f32.mrb[0].mxu0
        %v1084 = vpop.f32.mrb[0].mxu0
        %1085 = vdwg.mxu0
        %1087 = vrot.lane.b32.xlu0 %v815, 120
        %v1088 = vpop.permute.xlu0 %1087
        %1090 = vrot.lane.b32.xlu0 %v817, 120
        %v1091 = vpop.permute.xlu0 %1090
        %v1093 = vsel %vm820, %v1088, 0
        %v1096 = vsel %vm820, %v1091, 0
        %1098 = vmatprep.subr.bf16.mxu0 0
        %1099 = vmatpush1.bf16.xpose.msra.mxu0 %v1096
        %1100 = vmatprep.subr.bf16.mxu0 0
        %1101 = vmatpush1.bf16.xpose.msra.mxu0 0
        %1102 = vmatprep.subr.bf16.mxu0 0
        %1103 = vmatpush1.bf16.xpose.msra.mxu0 0
        %1104 = vmatprep.subr.bf16.mxu0 0
        %1105 = vmatpush1.bf16.xpose.msra.mxu0 0
        %1106 = vmatprep.subr.bf16.mxu0 0
        %1107 = vmatpush1.bf16.xpose.msra.mxu0 0
        %1108 = vmatprep.subr.bf16.mxu0 0
        %1109 = vmatpush1.bf16.xpose.msra.mxu0 0
        %1110 = vmatprep.subr.bf16.mxu0 0
        %1111 = vmatpush1.bf16.xpose.msra.mxu0 0
        %1112 = vmatprep.subr.bf16.mxu0 0
        %1113 = vmatpush1.bf16.xpose.msra.mxu0 0
        %1114 = vmatprep.subr.bf16.mxu0 0
        %1115 = vmatpush1.bf16.xpose.msra.mxu0 0
        %1116 = vmatprep.subr.bf16.mxu0 0
        %1117 = vmatpush1.bf16.xpose.msra.mxu0 0
        %1118 = vmatprep.subr.bf16.mxu0 0
        %1119 = vmatpush1.bf16.xpose.msra.mxu0 0
        %1120 = vmatprep.subr.bf16.mxu0 0
        %1121 = vmatpush1.bf16.xpose.msra.mxu0 0
        %1122 = vmatprep.subr.bf16.mxu0 0
        %1123 = vmatpush1.bf16.xpose.msra.mxu0 0
        %1124 = vmatprep.subr.bf16.mxu0 0
        %1125 = vmatpush1.bf16.xpose.msra.mxu0 0
        %1126 = vmatprep.subr.bf16.mxu0 0
        %1127 = vmatpush1.bf16.xpose.msra.mxu0 0
        %1128 = vmatprep.subr.bf16.mxu0 0
        %1129 = vmatpush1.bf16.xpose.msra.mxu0 0
        %1130 = vmatprep.mubr.bf16.mxu0 0
        %1131 = vmatmul.mubr.bf16.gmra.mrb[0].mxu0 %v1093
        %v1132 = vpop.f32.mrb[0].mxu0
        %v1133 = vadd.f32 0.0, %v1132
        %v1134 = vpop.f32.mrb[0].mxu0
        %v1135 = vpop.f32.mrb[0].mxu0
        %v1136 = vpop.f32.mrb[0].mxu0
        %1137 = vdwg.mxu0
        %v1138 = vsel %vm820, %v1081, -inf
        %1139 = vmax.xlane.f32.xlu0 %v1138
        %v1140 = vpop.xlane.xlu0 %1139
        %v1141 = vsel %vm820, %v1133, -inf
        %1142 = vmax.xlane.f32.xlu0 %v1141
        %v1143 = vpop.xlane.xlu0 %1142
        %v1144 = vsub.f32 %v1081, %v1140
        %v1145 = vsub.f32 %v1133, %v1143
        %v1146 = vmul.f32 %v1144, 1.442695
        %v1147 = vpow.pop %v1146
        %v1148 = vmul.f32 %v1145, 1.442695
        %v1149 = vpow.pop %v1148
        %v1150 = vsel %vm820, %v1147, 0.0
        %1151 = vadd.xlane.f32.xlu0 %v1150
        %v1152 = vpop.xlane.xlu0 %1151
        %v1153 = vsel %vm820, %v1149, 0.0
        %1154 = vadd.xlane.f32.xlu0 %v1153
        %v1155 = vpop.xlane.xlu0 %1154
        %v1156 = vrcp.pop %v1152
        %v1157 = vrcp.pop %v1155
        %v1158 = vmul.f32 %v1147, %v1156
        %v1159 = vmul.f32 %v1149, %v1157
        %v1160 = vadd.f32 %v935, %v1158
        %v1161 = vadd.f32 %v936, %v1159
        %v1162 = vpack.c.bf16 %v1158, %v1158
        %v1163 = vpack.c.bf16 %v1159, %v1159
        %1165 = vrot.lane.b32.xlu0 %v818, 120
        %v1166 = vpop.permute.xlu0 %1165
        %v1168 = vsel %vm820, %v1162, 0
        %v1171 = vsel %vm942, %v1166, 0
        %1173 = vmatprep.subr.bf16.mxu0 0
        %1174 = vmatpush1.bf16.msra.mxu0 %v1171
        %1175 = vmatprep.subr.bf16.mxu0 0
        %1176 = vmatpush1.bf16.msra.mxu0 0
        %1177 = vmatprep.subr.bf16.mxu0 0
        %1178 = vmatpush1.bf16.msra.mxu0 0
        %1179 = vmatprep.subr.bf16.mxu0 0
        %1180 = vmatpush1.bf16.msra.mxu0 0
        %1181 = vmatprep.subr.bf16.mxu0 0
        %1182 = vmatpush1.bf16.msra.mxu0 0
        %1183 = vmatprep.subr.bf16.mxu0 0
        %1184 = vmatpush1.bf16.msra.mxu0 0
        %1185 = vmatprep.subr.bf16.mxu0 0
        %1186 = vmatpush1.bf16.msra.mxu0 0
        %1187 = vmatprep.subr.bf16.mxu0 0
        %1188 = vmatpush1.bf16.msra.mxu0 0
        %1189 = vmatprep.subr.bf16.mxu0 0
        %1190 = vmatpush1.bf16.msra.mxu0 0
        %1191 = vmatprep.subr.bf16.mxu0 0
        %1192 = vmatpush1.bf16.msra.mxu0 0
        %1193 = vmatprep.subr.bf16.mxu0 0
        %1194 = vmatpush1.bf16.msra.mxu0 0
        %1195 = vmatprep.subr.bf16.mxu0 0
        %1196 = vmatpush1.bf16.msra.mxu0 0
        %1197 = vmatprep.subr.bf16.mxu0 0
        %1198 = vmatpush1.bf16.msra.mxu0 0
        %1199 = vmatprep.subr.bf16.mxu0 0
        %1200 = vmatpush1.bf16.msra.mxu0 0
        %1201 = vmatprep.subr.bf16.mxu0 0
        %1202 = vmatpush1.bf16.msra.mxu0 0
        %1203 = vmatprep.subr.bf16.mxu0 0
        %1204 = vmatpush1.bf16.msra.mxu0 0
        %1205 = vmatprep.mubr.bf16.mxu0 0
        %1206 = vmatmul.mubr.bf16.gmra.mrb[0].mxu0 %v1168
        %v1207 = vpop.f32.mrb[0].mxu0
        %v1208 = vadd.f32 0.0, %v1207
        %v1209 = vpop.f32.mrb[0].mxu0
        %v1210 = vpop.f32.mrb[0].mxu0
        %v1211 = vpop.f32.mrb[0].mxu0
        %1212 = vdwg.mxu0
        %1214 = vrot.lane.b32.xlu0 %v819, 120
        %v1215 = vpop.permute.xlu0 %1214
        %v1217 = vsel %vm820, %v1163, 0
        %v1220 = vsel %vm942, %v1215, 0
        %1222 = vmatprep.subr.bf16.mxu0 0
        %1223 = vmatpush1.bf16.msra.mxu0 %v1220
        %1224 = vmatprep.subr.bf16.mxu0 0
        %1225 = vmatpush1.bf16.msra.mxu0 0
        %1226 = vmatprep.subr.bf16.mxu0 0
        %1227 = vmatpush1.bf16.msra.mxu0 0
        %1228 = vmatprep.subr.bf16.mxu0 0
        %1229 = vmatpush1.bf16.msra.mxu0 0
        %1230 = vmatprep.subr.bf16.mxu0 0
        %1231 = vmatpush1.bf16.msra.mxu0 0
        %1232 = vmatprep.subr.bf16.mxu0 0
        %1233 = vmatpush1.bf16.msra.mxu0 0
        %1234 = vmatprep.subr.bf16.mxu0 0
        %1235 = vmatpush1.bf16.msra.mxu0 0
        %1236 = vmatprep.subr.bf16.mxu0 0
        %1237 = vmatpush1.bf16.msra.mxu0 0
        %1238 = vmatprep.subr.bf16.mxu0 0
        %1239 = vmatpush1.bf16.msra.mxu0 0
        %1240 = vmatprep.subr.bf16.mxu0 0
        %1241 = vmatpush1.bf16.msra.mxu0 0
        %1242 = vmatprep.subr.bf16.mxu0 0
        %1243 = vmatpush1.bf16.msra.mxu0 0
        %1244 = vmatprep.subr.bf16.mxu0 0
        %1245 = vmatpush1.bf16.msra.mxu0 0
        %1246 = vmatprep.subr.bf16.mxu0 0
        %1247 = vmatpush1.bf16.msra.mxu0 0
        %1248 = vmatprep.subr.bf16.mxu0 0
        %1249 = vmatpush1.bf16.msra.mxu0 0
        %1250 = vmatprep.subr.bf16.mxu0 0
        %1251 = vmatpush1.bf16.msra.mxu0 0
        %1252 = vmatprep.subr.bf16.mxu0 0
        %1253 = vmatpush1.bf16.msra.mxu0 0
        %1254 = vmatprep.mubr.bf16.mxu0 0
        %1255 = vmatmul.mubr.bf16.gmra.mrb[0].mxu0 %v1217
        %v1256 = vpop.f32.mrb[0].mxu0
        %v1257 = vadd.f32 0.0, %v1256
        %v1258 = vpop.f32.mrb[0].mxu0
        %v1259 = vpop.f32.mrb[0].mxu0
        %v1260 = vpop.f32.mrb[0].mxu0
        %1261 = vdwg.mxu0
        %v1262 = vpack.c.bf16 %v1257, %v1208
        %v1263 = vld [vmem:[%s565 + $0x4] sm:$0xf]
        %v1265 = vsel %vm820, %v1262, 0
        %v1268 = vsel %vm942, %v1263, 0
        %1270 = vmatprep.subr.bf16.mxu0 0
        %1271 = vmatpush1.bf16.msra.mxu0 %v1268
        %1272 = vmatprep.subr.bf16.mxu0 0
        %1273 = vmatpush1.bf16.msra.mxu0 0
        %1274 = vmatprep.subr.bf16.mxu0 0
        %1275 = vmatpush1.bf16.msra.mxu0 0
        %1276 = vmatprep.subr.bf16.mxu0 0
        %1277 = vmatpush1.bf16.msra.mxu0 0
        %1278 = vmatprep.subr.bf16.mxu0 0
        %1279 = vmatpush1.bf16.msra.mxu0 0
        %1280 = vmatprep.subr.bf16.mxu0 0
        %1281 = vmatpush1.bf16.msra.mxu0 0
        %1282 = vmatprep.subr.bf16.mxu0 0
        %1283 = vmatpush1.bf16.msra.mxu0 0
        %1284 = vmatprep.subr.bf16.mxu0 0
        %1285 = vmatpush1.bf16.msra.mxu0 0
        %1286 = vmatprep.subr.bf16.mxu0 0
        %1287 = vmatpush1.bf16.msra.mxu0 0
        %1288 = vmatprep.subr.bf16.mxu0 0
        %1289 = vmatpush1.bf16.msra.mxu0 0
        %1290 = vmatprep.subr.bf16.mxu0 0
        %1291 = vmatpush1.bf16.msra.mxu0 0
        %1292 = vmatprep.subr.bf16.mxu0 0
        %1293 = vmatpush1.bf16.msra.mxu0 0
        %1294 = vmatprep.subr.bf16.mxu0 0
        %1295 = vmatpush1.bf16.msra.mxu0 0
        %1296 = vmatprep.subr.bf16.mxu0 0
        %1297 = vmatpush1.bf16.msra.mxu0 0
        %1298 = vmatprep.subr.bf16.mxu0 0
        %1299 = vmatpush1.bf16.msra.mxu0 0
        %1300 = vmatprep.subr.bf16.mxu0 0
        %1301 = vmatpush1.bf16.msra.mxu0 0
        %1302 = vmatprep.mubr.bf16.mxu0 0
        %1303 = vmatmul.mubr.bf16.gmra.mrb[0].mxu0 %v1265
        %v1304 = vpop.f32.mrb[0].mxu0
        %v1305 = vadd.f32 0.0, %v1304
        %v1306 = vpop.f32.mrb[0].mxu0
        %v1307 = vpop.f32.mrb[0].mxu0
        %v1308 = vadd.f32 0.0, %v1307
        %v1309 = vpop.f32.mrb[0].mxu0
        %1310 = vdwg.mxu0
        %v1312 = vsel %vm820, %v1032, 0
        %v1315 = vsel %vm942, %v1033, 0
        %1317 = vmatprep.subr.bf16.mxu0 0
        %1318 = vmatpush1.bf16.msra.mxu0 %v1315
        %1319 = vmatprep.subr.bf16.mxu0 0
        %1320 = vmatpush1.bf16.msra.mxu0 0
        %1321 = vmatprep.subr.bf16.mxu0 0
        %1322 = vmatpush1.bf16.msra.mxu0 0
        %1323 = vmatprep.subr.bf16.mxu0 0
        %1324 = vmatpush1.bf16.msra.mxu0 0
        %1325 = vmatprep.subr.bf16.mxu0 0
        %1326 = vmatpush1.bf16.msra.mxu0 0
        %1327 = vmatprep.subr.bf16.mxu0 0
        %1328 = vmatpush1.bf16.msra.mxu0 0
        %1329 = vmatprep.subr.bf16.mxu0 0
        %1330 = vmatpush1.bf16.msra.mxu0 0
        %1331 = vmatprep.subr.bf16.mxu0 0
        %1332 = vmatpush1.bf16.msra.mxu0 0
        %1333 = vmatprep.subr.bf16.mxu0 0
        %1334 = vmatpush1.bf16.msra.mxu0 0
        %1335 = vmatprep.subr.bf16.mxu0 0
        %1336 = vmatpush1.bf16.msra.mxu0 0
        %1337 = vmatprep.subr.bf16.mxu0 0
        %1338 = vmatpush1.bf16.msra.mxu0 0
        %1339 = vmatprep.subr.bf16.mxu0 0
        %1340 = vmatpush1.bf16.msra.mxu0 0
        %1341 = vmatprep.subr.bf16.mxu0 0
        %1342 = vmatpush1.bf16.msra.mxu0 0
        %1343 = vmatprep.subr.bf16.mxu0 0
        %1344 = vmatpush1.bf16.msra.mxu0 0
        %1345 = vmatprep.subr.bf16.mxu0 0
        %1346 = vmatpush1.bf16.msra.mxu0 0
        %1347 = vmatprep.subr.bf16.mxu0 0
        %1348 = vmatpush1.bf16.msra.mxu0 0
        %1349 = vmatprep.mubr.bf16.mxu0 0
        %1350 = vmatmul.mubr.bf16.gmra.mrb[0].mxu0 %v1312
        %v1351 = vpop.f32.mrb[0].mxu0
        %v1352 = vadd.f32 %v1305, %v1351
        %v1353 = vpop.f32.mrb[0].mxu0
        %v1354 = vpop.f32.mrb[0].mxu0
        %v1355 = vadd.f32 %v1308, %v1354
        %v1356 = vpop.f32.mrb[0].mxu0
        %1357 = vdwg.mxu0
        %1358 = vrot.lane.b32.xlu0 %v814, 112
        %v1359 = vpop.permute.xlu0 %1358
        %1360 = vrot.lane.b32.xlu0 %v816, 112
        %v1361 = vpop.permute.xlu0 %1360
        %v1363 = vsel %vm820, %v1359, 0
        %v1366 = vsel %vm820, %v1361, 0
        %1368 = vmatprep.subr.bf16.mxu0 0
        %1369 = vmatpush1.bf16.xpose.msra.mxu0 %v1366
        %1370 = vmatprep.subr.bf16.mxu0 0
        %1371 = vmatpush1.bf16.xpose.msra.mxu0 0
        %1372 = vmatprep.subr.bf16.mxu0 0
        %1373 = vmatpush1.bf16.xpose.msra.mxu0 0
        %1374 = vmatprep.subr.bf16.mxu0 0
        %1375 = vmatpush1.bf16.xpose.msra.mxu0 0
        %1376 = vmatprep.subr.bf16.mxu0 0
        %1377 = vmatpush1.bf16.xpose.msra.mxu0 0
        %1378 = vmatprep.subr.bf16.mxu0 0
        %1379 = vmatpush1.bf16.xpose.msra.mxu0 0
        %1380 = vmatprep.subr.bf16.mxu0 0
        %1381 = vmatpush1.bf16.xpose.msra.mxu0 0
        %1382 = vmatprep.subr.bf16.mxu0 0
        %1383 = vmatpush1.bf16.xpose.msra.mxu0 0
        %1384 = vmatprep.subr.bf16.mxu0 0
        %1385 = vmatpush1.bf16.xpose.msra.mxu0 0
        %1386 = vmatprep.subr.bf16.mxu0 0
        %1387 = vmatpush1.bf16.xpose.msra.mxu0 0
        %1388 = vmatprep.subr.bf16.mxu0 0
        %1389 = vmatpush1.bf16.xpose.msra.mxu0 0
        %1390 = vmatprep.subr.bf16.mxu0 0
        %1391 = vmatpush1.bf16.xpose.msra.mxu0 0
        %1392 = vmatprep.subr.bf16.mxu0 0
        %1393 = vmatpush1.bf16.xpose.msra.mxu0 0
        %1394 = vmatprep.subr.bf16.mxu0 0
        %1395 = vmatpush1.bf16.xpose.msra.mxu0 0
        %1396 = vmatprep.subr.bf16.mxu0 0
        %1397 = vmatpush1.bf16.xpose.msra.mxu0 0
        %1398 = vmatprep.subr.bf16.mxu0 0
        %1399 = vmatpush1.bf16.xpose.msra.mxu0 0
        %1400 = vmatprep.mubr.bf16.mxu0 0
        %1401 = vmatmul.mubr.bf16.gmra.mrb[0].mxu0 %v1363
        %v1402 = vpop.f32.mrb[0].mxu0
        %v1403 = vadd.f32 0.0, %v1402
        %v1404 = vpop.f32.mrb[0].mxu0
        %v1405 = vpop.f32.mrb[0].mxu0
        %v1406 = vpop.f32.mrb[0].mxu0
        %1407 = vdwg.mxu0
        %1408 = vrot.lane.b32.xlu0 %v815, 112
        %v1409 = vpop.permute.xlu0 %1408
        %1410 = vrot.lane.b32.xlu0 %v817, 112
        %v1411 = vpop.permute.xlu0 %1410
        %v1413 = vsel %vm820, %v1409, 0
        %v1416 = vsel %vm820, %v1411, 0
        %1418 = vmatprep.subr.bf16.mxu0 0
        %1419 = vmatpush1.bf16.xpose.msra.mxu0 %v1416
        %1420 = vmatprep.subr.bf16.mxu0 0
        %1421 = vmatpush1.bf16.xpose.msra.mxu0 0
        %1422 = vmatprep.subr.bf16.mxu0 0
        %1423 = vmatpush1.bf16.xpose.msra.mxu0 0
        %1424 = vmatprep.subr.bf16.mxu0 0
        %1425 = vmatpush1.bf16.xpose.msra.mxu0 0
        %1426 = vmatprep.subr.bf16.mxu0 0
        %1427 = vmatpush1.bf16.xpose.msra.mxu0 0
        %1428 = vmatprep.subr.bf16.mxu0 0
        %1429 = vmatpush1.bf16.xpose.msra.mxu0 0
        %1430 = vmatprep.subr.bf16.mxu0 0
        %1431 = vmatpush1.bf16.xpose.msra.mxu0 0
        %1432 = vmatprep.subr.bf16.mxu0 0
        %1433 = vmatpush1.bf16.xpose.msra.mxu0 0
        %1434 = vmatprep.subr.bf16.mxu0 0
        %1435 = vmatpush1.bf16.xpose.msra.mxu0 0
        %1436 = vmatprep.subr.bf16.mxu0 0
        %1437 = vmatpush1.bf16.xpose.msra.mxu0 0
        %1438 = vmatprep.subr.bf16.mxu0 0
        %1439 = vmatpush1.bf16.xpose.msra.mxu0 0
        %1440 = vmatprep.subr.bf16.mxu0 0
        %1441 = vmatpush1.bf16.xpose.msra.mxu0 0
        %1442 = vmatprep.subr.bf16.mxu0 0
        %1443 = vmatpush1.bf16.xpose.msra.mxu0 0
        %1444 = vmatprep.subr.bf16.mxu0 0
        %1445 = vmatpush1.bf16.xpose.msra.mxu0 0
        %1446 = vmatprep.subr.bf16.mxu0 0
        %1447 = vmatpush1.bf16.xpose.msra.mxu0 0
        %1448 = vmatprep.subr.bf16.mxu0 0
        %1449 = vmatpush1.bf16.xpose.msra.mxu0 0
        %1450 = vmatprep.mubr.bf16.mxu0 0
        %1451 = vmatmul.mubr.bf16.gmra.mrb[0].mxu0 %v1413
        %v1452 = vpop.f32.mrb[0].mxu0
        %v1453 = vadd.f32 0.0, %v1452
        %v1454 = vpop.f32.mrb[0].mxu0
        %v1455 = vpop.f32.mrb[0].mxu0
        %v1456 = vpop.f32.mrb[0].mxu0
        %1457 = vdwg.mxu0
        %v1458 = vsel %vm820, %v1403, -inf
        %1459 = vmax.xlane.f32.xlu0 %v1458
        %v1460 = vpop.xlane.xlu0 %1459
        %v1461 = vsel %vm820, %v1453, -inf
        %1462 = vmax.xlane.f32.xlu0 %v1461
        %v1463 = vpop.xlane.xlu0 %1462
        %v1464 = vsub.f32 %v1403, %v1460
        %v1465 = vsub.f32 %v1453, %v1463
        %v1466 = vmul.f32 %v1464, 1.442695
        %v1467 = vpow.pop %v1466
        %v1468 = vmul.f32 %v1465, 1.442695
        %v1469 = vpow.pop %v1468
        %v1470 = vsel %vm820, %v1467, 0.0
        %1471 = vadd.xlane.f32.xlu0 %v1470
        %v1472 = vpop.xlane.xlu0 %1471
        %v1473 = vsel %vm820, %v1469, 0.0
        %1474 = vadd.xlane.f32.xlu0 %v1473
        %v1475 = vpop.xlane.xlu0 %1474
        %v1476 = vrcp.pop %v1472
        %v1477 = vrcp.pop %v1475
        %v1478 = vmul.f32 %v1467, %v1476
        %v1479 = vmul.f32 %v1469, %v1477
        %v1480 = vadd.f32 %v1160, %v1478
        %v1481 = vadd.f32 %v1161, %v1479
        %v1482 = vpack.c.bf16 %v1478, %v1478
        %v1483 = vpack.c.bf16 %v1479, %v1479
        %1484 = vrot.lane.b32.xlu0 %v818, 112
        %v1485 = vpop.permute.xlu0 %1484
        %v1487 = vsel %vm820, %v1482, 0
        %v1490 = vsel %vm942, %v1485, 0
        %1492 = vmatprep.subr.bf16.mxu0 0
        %1493 = vmatpush1.bf16.msra.mxu0 %v1490
        %1494 = vmatprep.subr.bf16.mxu0 0
        %1495 = vmatpush1.bf16.msra.mxu0 0
        %1496 = vmatprep.subr.bf16.mxu0 0
        %1497 = vmatpush1.bf16.msra.mxu0 0
        %1498 = vmatprep.subr.bf16.mxu0 0
        %1499 = vmatpush1.bf16.msra.mxu0 0
        %1500 = vmatprep.subr.bf16.mxu0 0
        %1501 = vmatpush1.bf16.msra.mxu0 0
        %1502 = vmatprep.subr.bf16.mxu0 0
        %1503 = vmatpush1.bf16.msra.mxu0 0
        %1504 = vmatprep.subr.bf16.mxu0 0
        %1505 = vmatpush1.bf16.msra.mxu0 0
        %1506 = vmatprep.subr.bf16.mxu0 0
        %1507 = vmatpush1.bf16.msra.mxu0 0
        %1508 = vmatprep.subr.bf16.mxu0 0
        %1509 = vmatpush1.bf16.msra.mxu0 0
        %1510 = vmatprep.subr.bf16.mxu0 0
        %1511 = vmatpush1.bf16.msra.mxu0 0
        %1512 = vmatprep.subr.bf16.mxu0 0
        %1513 = vmatpush1.bf16.msra.mxu0 0
        %1514 = vmatprep.subr.bf16.mxu0 0
        %1515 = vmatpush1.bf16.msra.mxu0 0
        %1516 = vmatprep.subr.bf16.mxu0 0
        %1517 = vmatpush1.bf16.msra.mxu0 0
        %1518 = vmatprep.subr.bf16.mxu0 0
        %1519 = vmatpush1.bf16.msra.mxu0 0
        %1520 = vmatprep.subr.bf16.mxu0 0
        %1521 = vmatpush1.bf16.msra.mxu0 0
        %1522 = vmatprep.subr.bf16.mxu0 0
        %1523 = vmatpush1.bf16.msra.mxu0 0
        %1524 = vmatprep.mubr.bf16.mxu0 0
        %1525 = vmatmul.mubr.bf16.gmra.mrb[0].mxu0 %v1487
        %v1526 = vpop.f32.mrb[0].mxu0
        %v1527 = vadd.f32 0.0, %v1526
        %v1528 = vpop.f32.mrb[0].mxu0
        %v1529 = vpop.f32.mrb[0].mxu0
        %v1530 = vpop.f32.mrb[0].mxu0
        %1531 = vdwg.mxu0
        %1532 = vrot.lane.b32.xlu0 %v819, 112
        %v1533 = vpop.permute.xlu0 %1532
        %v1535 = vsel %vm820, %v1483, 0
        %v1538 = vsel %vm942, %v1533, 0
        %1540 = vmatprep.subr.bf16.mxu0 0
        %1541 = vmatpush1.bf16.msra.mxu0 %v1538
        %1542 = vmatprep.subr.bf16.mxu0 0
        %1543 = vmatpush1.bf16.msra.mxu0 0
        %1544 = vmatprep.subr.bf16.mxu0 0
        %1545 = vmatpush1.bf16.msra.mxu0 0
        %1546 = vmatprep.subr.bf16.mxu0 0
        %1547 = vmatpush1.bf16.msra.mxu0 0
        %1548 = vmatprep.subr.bf16.mxu0 0
        %1549 = vmatpush1.bf16.msra.mxu0 0
        %1550 = vmatprep.subr.bf16.mxu0 0
        %1551 = vmatpush1.bf16.msra.mxu0 0
        %1552 = vmatprep.subr.bf16.mxu0 0
        %1553 = vmatpush1.bf16.msra.mxu0 0
        %1554 = vmatprep.subr.bf16.mxu0 0
        %1555 = vmatpush1.bf16.msra.mxu0 0
        %1556 = vmatprep.subr.bf16.mxu0 0
        %1557 = vmatpush1.bf16.msra.mxu0 0
        %1558 = vmatprep.subr.bf16.mxu0 0
        %1559 = vmatpush1.bf16.msra.mxu0 0
        %1560 = vmatprep.subr.bf16.mxu0 0
        %1561 = vmatpush1.bf16.msra.mxu0 0
        %1562 = vmatprep.subr.bf16.mxu0 0
        %1563 = vmatpush1.bf16.msra.mxu0 0
        %1564 = vmatprep.subr.bf16.mxu0 0
        %1565 = vmatpush1.bf16.msra.mxu0 0
        %1566 = vmatprep.subr.bf16.mxu0 0
        %1567 = vmatpush1.bf16.msra.mxu0 0
        %1568 = vmatprep.subr.bf16.mxu0 0
        %1569 = vmatpush1.bf16.msra.mxu0 0
        %1570 = vmatprep.subr.bf16.mxu0 0
        %1571 = vmatpush1.bf16.msra.mxu0 0
        %1572 = vmatprep.mubr.bf16.mxu0 0
        %1573 = vmatmul.mubr.bf16.gmra.mrb[0].mxu0 %v1535
        %v1574 = vpop.f32.mrb[0].mxu0
        %v1575 = vadd.f32 0.0, %v1574
        %v1576 = vpop.f32.mrb[0].mxu0
        %v1577 = vpop.f32.mrb[0].mxu0
        %v1578 = vpop.f32.mrb[0].mxu0
        %1579 = vdwg.mxu0
        %v1580 = vpack.c.bf16 %v1575, %v1527
        %v1581 = vld [vmem:[%s565 + $0x8] sm:$0xf]
        %v1583 = vsel %vm820, %v1580, 0
        %v1586 = vsel %vm942, %v1581, 0
        %1588 = vmatprep.subr.bf16.mxu0 0
        %1589 = vmatpush1.bf16.msra.mxu0 %v1586
        %1590 = vmatprep.subr.bf16.mxu0 0
        %1591 = vmatpush1.bf16.msra.mxu0 0
        %1592 = vmatprep.subr.bf16.mxu0 0
        %1593 = vmatpush1.bf16.msra.mxu0 0
        %1594 = vmatprep.subr.bf16.mxu0 0
        %1595 = vmatpush1.bf16.msra.mxu0 0
        %1596 = vmatprep.subr.bf16.mxu0 0
        %1597 = vmatpush1.bf16.msra.mxu0 0
        %1598 = vmatprep.subr.bf16.mxu0 0
        %1599 = vmatpush1.bf16.msra.mxu0 0
        %1600 = vmatprep.subr.bf16.mxu0 0
        %1601 = vmatpush1.bf16.msra.mxu0 0
        %1602 = vmatprep.subr.bf16.mxu0 0
        %1603 = vmatpush1.bf16.msra.mxu0 0
        %1604 = vmatprep.subr.bf16.mxu0 0
        %1605 = vmatpush1.bf16.msra.mxu0 0
        %1606 = vmatprep.subr.bf16.mxu0 0
        %1607 = vmatpush1.bf16.msra.mxu0 0
        %1608 = vmatprep.subr.bf16.mxu0 0
        %1609 = vmatpush1.bf16.msra.mxu0 0
        %1610 = vmatprep.subr.bf16.mxu0 0
        %1611 = vmatpush1.bf16.msra.mxu0 0
        %1612 = vmatprep.subr.bf16.mxu0 0
        %1613 = vmatpush1.bf16.msra.mxu0 0
        %1614 = vmatprep.subr.bf16.mxu0 0
        %1615 = vmatpush1.bf16.msra.mxu0 0
        %1616 = vmatprep.subr.bf16.mxu0 0
        %1617 = vmatpush1.bf16.msra.mxu0 0
        %1618 = vmatprep.subr.bf16.mxu0 0
        %1619 = vmatpush1.bf16.msra.mxu0 0
        %1620 = vmatprep.mubr.bf16.mxu0 0
        %1621 = vmatmul.mubr.bf16.gmra.mrb[0].mxu0 %v1583
        %v1622 = vpop.f32.mrb[0].mxu0
        %v1623 = vadd.f32 0.0, %v1622
        %v1624 = vpop.f32.mrb[0].mxu0
        %v1625 = vpop.f32.mrb[0].mxu0
        %v1626 = vadd.f32 0.0, %v1625
        %v1627 = vpop.f32.mrb[0].mxu0
        %1628 = vdwg.mxu0
        %v1629 = vadd.f32 %v1352, %v1623
        %v1630 = vadd.f32 %v1355, %v1626
        %1631 = vrot.lane.b32.xlu0 %v814, 104
        %v1632 = vpop.permute.xlu0 %1631
        %1633 = vrot.lane.b32.xlu0 %v816, 104
        %v1634 = vpop.permute.xlu0 %1633
        %v1636 = vsel %vm820, %v1632, 0
        %v1639 = vsel %vm820, %v1634, 0
        %1641 = vmatprep.subr.bf16.mxu0 0
        %1642 = vmatpush1.bf16.xpose.msra.mxu0 %v1639
        %1643 = vmatprep.subr.bf16.mxu0 0
        %1644 = vmatpush1.bf16.xpose.msra.mxu0 0
        %1645 = vmatprep.subr.bf16.mxu0 0
        %1646 = vmatpush1.bf16.xpose.msra.mxu0 0
        %1647 = vmatprep.subr.bf16.mxu0 0
        %1648 = vmatpush1.bf16.xpose.msra.mxu0 0
        %1649 = vmatprep.subr.bf16.mxu0 0
        %1650 = vmatpush1.bf16.xpose.msra.mxu0 0
        %1651 = vmatprep.subr.bf16.mxu0 0
        %1652 = vmatpush1.bf16.xpose.msra.mxu0 0
        %1653 = vmatprep.subr.bf16.mxu0 0
        %1654 = vmatpush1.bf16.xpose.msra.mxu0 0
        %1655 = vmatprep.subr.bf16.mxu0 0
        %1656 = vmatpush1.bf16.xpose.msra.mxu0 0
        %1657 = vmatprep.subr.bf16.mxu0 0
        %1658 = vmatpush1.bf16.xpose.msra.mxu0 0
        %1659 = vmatprep.subr.bf16.mxu0 0
        %1660 = vmatpush1.bf16.xpose.msra.mxu0 0
        %1661 = vmatprep.subr.bf16.mxu0 0
        %1662 = vmatpush1.bf16.xpose.msra.mxu0 0
        %1663 = vmatprep.subr.bf16.mxu0 0
        %1664 = vmatpush1.bf16.xpose.msra.mxu0 0
        %1665 = vmatprep.subr.bf16.mxu0 0
        %1666 = vmatpush1.bf16.xpose.msra.mxu0 0
        %1667 = vmatprep.subr.bf16.mxu0 0
        %1668 = vmatpush1.bf16.xpose.msra.mxu0 0
        %1669 = vmatprep.subr.bf16.mxu0 0
        %1670 = vmatpush1.bf16.xpose.msra.mxu0 0
        %1671 = vmatprep.subr.bf16.mxu0 0
        %1672 = vmatpush1.bf16.xpose.msra.mxu0 0
        %1673 = vmatprep.mubr.bf16.mxu0 0
        %1674 = vmatmul.mubr.bf16.gmra.mrb[0].mxu0 %v1636
        %v1675 = vpop.f32.mrb[0].mxu0
        %v1676 = vadd.f32 0.0, %v1675
        %v1677 = vpop.f32.mrb[0].mxu0
        %v1678 = vpop.f32.mrb[0].mxu0
        %v1679 = vpop.f32.mrb[0].mxu0
        %1680 = vdwg.mxu0
        %1681 = vrot.lane.b32.xlu0 %v815, 104
        %v1682 = vpop.permute.xlu0 %1681
        %1683 = vrot.lane.b32.xlu0 %v817, 104
        %v1684 = vpop.permute.xlu0 %1683
        %v1686 = vsel %vm820, %v1682, 0
        %v1689 = vsel %vm820, %v1684, 0
        %1691 = vmatprep.subr.bf16.mxu0 0
        %1692 = vmatpush1.bf16.xpose.msra.mxu0 %v1689
        %1693 = vmatprep.subr.bf16.mxu0 0
        %1694 = vmatpush1.bf16.xpose.msra.mxu0 0
        %1695 = vmatprep.subr.bf16.mxu0 0
        %1696 = vmatpush1.bf16.xpose.msra.mxu0 0
        %1697 = vmatprep.subr.bf16.mxu0 0
        %1698 = vmatpush1.bf16.xpose.msra.mxu0 0
        %1699 = vmatprep.subr.bf16.mxu0 0
        %1700 = vmatpush1.bf16.xpose.msra.mxu0 0
        %1701 = vmatprep.subr.bf16.mxu0 0
        %1702 = vmatpush1.bf16.xpose.msra.mxu0 0
        %1703 = vmatprep.subr.bf16.mxu0 0
        %1704 = vmatpush1.bf16.xpose.msra.mxu0 0
        %1705 = vmatprep.subr.bf16.mxu0 0
        %1706 = vmatpush1.bf16.xpose.msra.mxu0 0
        %1707 = vmatprep.subr.bf16.mxu0 0
        %1708 = vmatpush1.bf16.xpose.msra.mxu0 0
        %1709 = vmatprep.subr.bf16.mxu0 0
        %1710 = vmatpush1.bf16.xpose.msra.mxu0 0
        %1711 = vmatprep.subr.bf16.mxu0 0
        %1712 = vmatpush1.bf16.xpose.msra.mxu0 0
        %1713 = vmatprep.subr.bf16.mxu0 0
        %1714 = vmatpush1.bf16.xpose.msra.mxu0 0
        %1715 = vmatprep.subr.bf16.mxu0 0
        %1716 = vmatpush1.bf16.xpose.msra.mxu0 0
        %1717 = vmatprep.subr.bf16.mxu0 0
        %1718 = vmatpush1.bf16.xpose.msra.mxu0 0
        %1719 = vmatprep.subr.bf16.mxu0 0
        %1720 = vmatpush1.bf16.xpose.msra.mxu0 0
        %1721 = vmatprep.subr.bf16.mxu0 0
        %1722 = vmatpush1.bf16.xpose.msra.mxu0 0
        %1723 = vmatprep.mubr.bf16.mxu0 0
        %1724 = vmatmul.mubr.bf16.gmra.mrb[0].mxu0 %v1686
        %v1725 = vpop.f32.mrb[0].mxu0
        %v1726 = vadd.f32 0.0, %v1725
        %v1727 = vpop.f32.mrb[0].mxu0
        %v1728 = vpop.f32.mrb[0].mxu0
        %v1729 = vpop.f32.mrb[0].mxu0
        %1730 = vdwg.mxu0
        %v1731 = vsel %vm820, %v1676, -inf
        %1732 = vmax.xlane.f32.xlu0 %v1731
        %v1733 = vpop.xlane.xlu0 %1732
        %v1734 = vsel %vm820, %v1726, -inf
        %1735 = vmax.xlane.f32.xlu0 %v1734
        %v1736 = vpop.xlane.xlu0 %1735
        %v1737 = vsub.f32 %v1676, %v1733
        %v1738 = vsub.f32 %v1726, %v1736
        %v1739 = vmul.f32 %v1737, 1.442695
        %v1740 = vpow.pop %v1739
        %v1741 = vmul.f32 %v1738, 1.442695
        %v1742 = vpow.pop %v1741
        %v1743 = vsel %vm820, %v1740, 0.0
        %1744 = vadd.xlane.f32.xlu0 %v1743
        %v1745 = vpop.xlane.xlu0 %1744
        %v1746 = vsel %vm820, %v1742, 0.0
        %1747 = vadd.xlane.f32.xlu0 %v1746
        %v1748 = vpop.xlane.xlu0 %1747
        %v1749 = vrcp.pop %v1745
        %v1750 = vrcp.pop %v1748
        %v1751 = vmul.f32 %v1740, %v1749
        %v1752 = vmul.f32 %v1742, %v1750
        %v1753 = vadd.f32 %v1480, %v1751
        %v1754 = vadd.f32 %v1481, %v1752
        %v1755 = vpack.c.bf16 %v1751, %v1751
        %v1756 = vpack.c.bf16 %v1752, %v1752
        %1757 = vrot.lane.b32.xlu0 %v818, 104
        %v1758 = vpop.permute.xlu0 %1757
        %v1760 = vsel %vm820, %v1755, 0
        %v1763 = vsel %vm942, %v1758, 0
        %1765 = vmatprep.subr.bf16.mxu0 0
        %1766 = vmatpush1.bf16.msra.mxu0 %v1763
        %1767 = vmatprep.subr.bf16.mxu0 0
        %1768 = vmatpush1.bf16.msra.mxu0 0
        %1769 = vmatprep.subr.bf16.mxu0 0
        %1770 = vmatpush1.bf16.msra.mxu0 0
        %1771 = vmatprep.subr.bf16.mxu0 0
        %1772 = vmatpush1.bf16.msra.mxu0 0
        %1773 = vmatprep.subr.bf16.mxu0 0
        %1774 = vmatpush1.bf16.msra.mxu0 0
        %1775 = vmatprep.subr.bf16.mxu0 0
        %1776 = vmatpush1.bf16.msra.mxu0 0
        %1777 = vmatprep.subr.bf16.mxu0 0
        %1778 = vmatpush1.bf16.msra.mxu0 0
        %1779 = vmatprep.subr.bf16.mxu0 0
        %1780 = vmatpush1.bf16.msra.mxu0 0
        %1781 = vmatprep.subr.bf16.mxu0 0
        %1782 = vmatpush1.bf16.msra.mxu0 0
        %1783 = vmatprep.subr.bf16.mxu0 0
        %1784 = vmatpush1.bf16.msra.mxu0 0
        %1785 = vmatprep.subr.bf16.mxu0 0
        %1786 = vmatpush1.bf16.msra.mxu0 0
        %1787 = vmatprep.subr.bf16.mxu0 0
        %1788 = vmatpush1.bf16.msra.mxu0 0
        %1789 = vmatprep.subr.bf16.mxu0 0
        %1790 = vmatpush1.bf16.msra.mxu0 0
        %1791 = vmatprep.subr.bf16.mxu0 0
        %1792 = vmatpush1.bf16.msra.mxu0 0
        %1793 = vmatprep.subr.bf16.mxu0 0
        %1794 = vmatpush1.bf16.msra.mxu0 0
        %1795 = vmatprep.subr.bf16.mxu0 0
        %1796 = vmatpush1.bf16.msra.mxu0 0
        %1797 = vmatprep.mubr.bf16.mxu0 0
        %1798 = vmatmul.mubr.bf16.gmra.mrb[0].mxu0 %v1760
        %v1799 = vpop.f32.mrb[0].mxu0
        %v1800 = vadd.f32 0.0, %v1799
        %v1801 = vpop.f32.mrb[0].mxu0
        %v1802 = vpop.f32.mrb[0].mxu0
        %v1803 = vpop.f32.mrb[0].mxu0
        %1804 = vdwg.mxu0
        %1805 = vrot.lane.b32.xlu0 %v819, 104
        %v1806 = vpop.permute.xlu0 %1805
        %v1808 = vsel %vm820, %v1756, 0
        %v1811 = vsel %vm942, %v1806, 0
        %1813 = vmatprep.subr.bf16.mxu0 0
        %1814 = vmatpush1.bf16.msra.mxu0 %v1811
        %1815 = vmatprep.subr.bf16.mxu0 0
        %1816 = vmatpush1.bf16.msra.mxu0 0
        %1817 = vmatprep.subr.bf16.mxu0 0
        %1818 = vmatpush1.bf16.msra.mxu0 0
        %1819 = vmatprep.subr.bf16.mxu0 0
        %1820 = vmatpush1.bf16.msra.mxu0 0
        %1821 = vmatprep.subr.bf16.mxu0 0
        %1822 = vmatpush1.bf16.msra.mxu0 0
        %1823 = vmatprep.subr.bf16.mxu0 0
        %1824 = vmatpush1.bf16.msra.mxu0 0
        %1825 = vmatprep.subr.bf16.mxu0 0
        %1826 = vmatpush1.bf16.msra.mxu0 0
        %1827 = vmatprep.subr.bf16.mxu0 0
        %1828 = vmatpush1.bf16.msra.mxu0 0
        %1829 = vmatprep.subr.bf16.mxu0 0
        %1830 = vmatpush1.bf16.msra.mxu0 0
        %1831 = vmatprep.subr.bf16.mxu0 0
        %1832 = vmatpush1.bf16.msra.mxu0 0
        %1833 = vmatprep.subr.bf16.mxu0 0
        %1834 = vmatpush1.bf16.msra.mxu0 0
        %1835 = vmatprep.subr.bf16.mxu0 0
        %1836 = vmatpush1.bf16.msra.mxu0 0
        %1837 = vmatprep.subr.bf16.mxu0 0
        %1838 = vmatpush1.bf16.msra.mxu0 0
        %1839 = vmatprep.subr.bf16.mxu0 0
        %1840 = vmatpush1.bf16.msra.mxu0 0
        %1841 = vmatprep.subr.bf16.mxu0 0
        %1842 = vmatpush1.bf16.msra.mxu0 0
        %1843 = vmatprep.subr.bf16.mxu0 0
        %1844 = vmatpush1.bf16.msra.mxu0 0
        %1845 = vmatprep.mubr.bf16.mxu0 0
        %1846 = vmatmul.mubr.bf16.gmra.mrb[0].mxu0 %v1808
        %v1847 = vpop.f32.mrb[0].mxu0
        %v1848 = vadd.f32 0.0, %v1847
        %v1849 = vpop.f32.mrb[0].mxu0
        %v1850 = vpop.f32.mrb[0].mxu0
        %v1851 = vpop.f32.mrb[0].mxu0
        %1852 = vdwg.mxu0
        %v1853 = vpack.c.bf16 %v1848, %v1800
        %v1854 = vld [vmem:[%s565 + $0xc] sm:$0xf]
        %v1856 = vsel %vm820, %v1853, 0
        %v1859 = vsel %vm942, %v1854, 0
        %1861 = vmatprep.subr.bf16.mxu0 0
        %1862 = vmatpush1.bf16.msra.mxu0 %v1859
        %1863 = vmatprep.subr.bf16.mxu0 0
        %1864 = vmatpush1.bf16.msra.mxu0 0
        %1865 = vmatprep.subr.bf16.mxu0 0
        %1866 = vmatpush1.bf16.msra.mxu0 0
        %1867 = vmatprep.subr.bf16.mxu0 0
        %1868 = vmatpush1.bf16.msra.mxu0 0
        %1869 = vmatprep.subr.bf16.mxu0 0
        %1870 = vmatpush1.bf16.msra.mxu0 0
        %1871 = vmatprep.subr.bf16.mxu0 0
        %1872 = vmatpush1.bf16.msra.mxu0 0
        %1873 = vmatprep.subr.bf16.mxu0 0
        %1874 = vmatpush1.bf16.msra.mxu0 0
        %1875 = vmatprep.subr.bf16.mxu0 0
        %1876 = vmatpush1.bf16.msra.mxu0 0
        %1877 = vmatprep.subr.bf16.mxu0 0
        %1878 = vmatpush1.bf16.msra.mxu0 0
        %1879 = vmatprep.subr.bf16.mxu0 0
        %1880 = vmatpush1.bf16.msra.mxu0 0
        %1881 = vmatprep.subr.bf16.mxu0 0
        %1882 = vmatpush1.bf16.msra.mxu0 0
        %1883 = vmatprep.subr.bf16.mxu0 0
        %1884 = vmatpush1.bf16.msra.mxu0 0
        %1885 = vmatprep.subr.bf16.mxu0 0
        %1886 = vmatpush1.bf16.msra.mxu0 0
        %1887 = vmatprep.subr.bf16.mxu0 0
        %1888 = vmatpush1.bf16.msra.mxu0 0
        %1889 = vmatprep.subr.bf16.mxu0 0
        %1890 = vmatpush1.bf16.msra.mxu0 0
        %1891 = vmatprep.subr.bf16.mxu0 0
        %1892 = vmatpush1.bf16.msra.mxu0 0
        %1893 = vmatprep.mubr.bf16.mxu0 0
        %1894 = vmatmul.mubr.bf16.gmra.mrb[0].mxu0 %v1856
        %v1895 = vpop.f32.mrb[0].mxu0
        %v1896 = vadd.f32 0.0, %v1895
        %v1897 = vpop.f32.mrb[0].mxu0
        %v1898 = vpop.f32.mrb[0].mxu0
        %v1899 = vadd.f32 0.0, %v1898
        %v1900 = vpop.f32.mrb[0].mxu0
        %1901 = vdwg.mxu0
        %v1902 = vadd.f32 %v1629, %v1896
        %v1903 = vadd.f32 %v1630, %v1899
        %v1904 = vmul.f32 %v1753, 0.25
        %v1905 = vmul.f32 %v1754, 0.25
        %1906 = vst.msk [vmem:[%s539] sm:$0xff] %vm820, %v1904
        %1907 = vst.msk [vmem:[%s539 + $0x8] sm:$0xff] %vm820, %v1905
        %v1908 = vadd.f32 %v585, %v1902
        %v1909 = vadd.f32 %v586, %v1903
        %v1910 = vlaneseq
        %v1911 = vshrl.u32 %v1910, 7
        %v1912 = vsub.s32 5, %v1911
        %v1913 = vrot.slane %v583, %v1912
        %v1914 = vadd.f32 %v1908, %v1913
        %v1915 = vadd.f32 %v1909, %v1913
        %v1916 = vsel %vm587, %v1914, 0.0
        %1917 = vadd.xlane.f32.xlu0 %v1916
        %v1918 = vpop.xlane.xlu0 %1917
        %v1919 = vsel %vm587, %v1915, 0.0
        %1920 = vadd.xlane.f32.xlu0 %v1919
        %v1921 = vpop.xlane.xlu0 %1920
        %v1922 = vmul.f32 %v1918, %v594
        %v1923 = vmul.f32 %v1921, %v594
        %v1924 = vsub.f32 %v1914, %v1922
        %v1925 = vsub.f32 %v1915, %v1923
        %v1926 = vmul.f32 %v1924, %v1924
        %v1927 = vmul.f32 %v1925, %v1925
        %v1928 = vsel %vm587, %v1926, 0.0
        %1929 = vadd.xlane.f32.xlu0 %v1928
        %v1930 = vpop.xlane.xlu0 %1929
        %v1931 = vsel %vm587, %v1927, 0.0
        %1932 = vadd.xlane.f32.xlu0 %v1931
        %v1933 = vpop.xlane.xlu0 %1932
        %v1934 = vmul.f32 %v1930, %v594
        %v1935 = vmul.f32 %v1933, %v594
        %v1936 = vadd.f32 %v1934, 1e-05
        %v1937 = vadd.f32 %v1935, 1e-05
        %v1938 = vrsqrt.pop %v1936
        %v1939 = vrsqrt.pop %v1937
        %v1940 = vmul.f32 %v1924, %v1938
        %v1941 = vmul.f32 %v1925, %v1939
        %v1942 = vlaneseq
        %v1943 = vshrl.u32 %v1942, 7
        %v1944 = vsub.s32 6, %v1943
        %v1945 = vrot.slane %v583, %v1944
        %v1946 = vmul.f32 %v1940, %v1945
        %v1947 = vmul.f32 %v1941, %v1945
        %v1948 = vlaneseq
        %v1949 = vshrl.u32 %v1948, 7
        %v1950 = vsub.s32 7, %v1949
        %v1951 = vrot.slane %v583, %v1950
        %v1952 = vadd.f32 %v1946, %v1951
        %v1953 = vadd.f32 %v1947, %v1951
        %v1954 = vld [vmem:[%s469] sm:$0xf]
        %v1955 = vld [vmem:[%s469 + $0x4] sm:$0xf]
        %v1956 = vld [vmem:[%s469 + $0x8] sm:$0xf]
        %v1957 = vld [vmem:[%s469 + $0xc] sm:$0xf]
        %v1958 = vpack.c.bf16 %v1953, %v1952
        %v1959 = vld [vmem:[%s460] sm:$0x1]
        %v1961 = vlaneseq
        %v1962 = vshrl.u32 %v1961, 7
        %v1963 = vsub.s32 0, %v1962
        %v1964 = vrot.slane %v1959, %v1963
        %v1970 = vunpack.c.l.b16 %v1954
        %v1971 = vunpack.c.l.b16 %v1955
        %v1972 = vunpack.c.l.b16 %v1956
        %v1973 = vunpack.c.l.b16 %v1957
        %v1974 = vpack.c.b16 %v1971, %v1970
        %v1975 = vpack.c.b16 %v1973, %v1972
        %v1979 = vsel %vm587, %v1958, 0
        %1981 = vmatprep.subr.bf16.mxu0 0
        %1982 = vmatpush1.bf16.msra.mxu0 %v1974
        %1983 = vmatprep.subr.bf16.mxu0 0
        %1984 = vmatpush1.bf16.msra.mxu0 %v1975
        %1985 = vmatprep.subr.bf16.mxu0 0
        %1986 = vmatpush1.bf16.msra.mxu0 0
        %1987 = vmatprep.subr.bf16.mxu0 0
        %1988 = vmatpush1.bf16.msra.mxu0 0
        %1989 = vmatprep.subr.bf16.mxu0 0
        %1990 = vmatpush1.bf16.msra.mxu0 0
        %1991 = vmatprep.subr.bf16.mxu0 0
        %1992 = vmatpush1.bf16.msra.mxu0 0
        %1993 = vmatprep.subr.bf16.mxu0 0
        %1994 = vmatpush1.bf16.msra.mxu0 0
        %1995 = vmatprep.subr.bf16.mxu0 0
        %1996 = vmatpush1.bf16.msra.mxu0 0
        %1997 = vmatprep.subr.bf16.mxu0 0
        %1998 = vmatpush1.bf16.msra.mxu0 0
        %1999 = vmatprep.subr.bf16.mxu0 0
        %2000 = vmatpush1.bf16.msra.mxu0 0
        %2001 = vmatprep.subr.bf16.mxu0 0
        %2002 = vmatpush1.bf16.msra.mxu0 0
        %2003 = vmatprep.subr.bf16.mxu0 0
        %2004 = vmatpush1.bf16.msra.mxu0 0
        %2005 = vmatprep.subr.bf16.mxu0 0
        %2006 = vmatpush1.bf16.msra.mxu0 0
        %2007 = vmatprep.subr.bf16.mxu0 0
        %2008 = vmatpush1.bf16.msra.mxu0 0
        %2009 = vmatprep.subr.bf16.mxu0 0
        %2010 = vmatpush1.bf16.msra.mxu0 0
        %2011 = vmatprep.subr.bf16.mxu0 0
        %2012 = vmatpush1.bf16.msra.mxu0 0
        %2013 = vmatprep.mubr.bf16.mxu0 0
        %2014 = vmatmul.mubr.bf16.gmra.mrb[0].mxu0 %v1979
        %v2015 = vpop.f32.mrb[0].mxu0
        %v2016 = vadd.f32 %v1964, %v2015
        %v2017 = vpop.f32.mrb[0].mxu0
        %v2018 = vpop.f32.mrb[0].mxu0
        %v2019 = vadd.f32 %v1964, %v2018
        %v2020 = vpop.f32.mrb[0].mxu0
        %2021 = vdwg.mxu0
        %v2022 = vmul.f32 %v2016, 0.5
        %v2023 = vmul.f32 %v2019, 0.5
        %v2024 = vmul.f32 %v2016, 0.70710677
        %v2025 = vmul.f32 %v2019, 0.70710677
        %v2026 = verf.f32.pop %v2024
        %v2027 = verf.f32.pop %v2025
        %v2028 = vadd.f32 %v2026, 1.0
        %v2029 = vadd.f32 %v2027, 1.0
        %v2030 = vmul.f32 %v2022, %v2028
        %v2031 = vmul.f32 %v2023, %v2029
        %v2032 = vld [vmem:[%s570] sm:$0xf]
        %v2033 = vld [vmem:[%s570 + $0x4] sm:$0xf]
        %v2034 = vld [vmem:[%s570 + $0x8] sm:$0xf]
        %v2035 = vld [vmem:[%s570 + $0xc] sm:$0xf]
        %v2036 = vld [vmem:[%s570 + $0x10] sm:$0xf]
        %v2037 = vld [vmem:[%s570 + $0x14] sm:$0xf]
        %v2038 = vld [vmem:[%s570 + $0x18] sm:$0xf]
        %v2039 = vld [vmem:[%s570 + $0x1c] sm:$0xf]
        %v2040 = vpack.c.bf16 %v2031, %v2030
        %v2041 = vlaneseq
        %v2042 = vshrl.u32 %v2041, 7
        %v2043 = vsub.s32 0, %v2042
        %v2044 = vrot.slane %v584, %v2043
        %v2053 = vunpack.c.l.b16 %v2032
        %v2054 = vunpack.c.l.b16 %v2033
        %v2055 = vunpack.c.l.b16 %v2034
        %v2056 = vunpack.c.l.b16 %v2035
        %v2057 = vunpack.c.l.b16 %v2036
        %v2058 = vunpack.c.l.b16 %v2037
        %v2059 = vunpack.c.l.b16 %v2038
        %v2060 = vunpack.c.l.b16 %v2039
        %v2061 = vpack.c.b16 %v2054, %v2053
        %v2062 = vpack.c.b16 %v2056, %v2055
        %v2063 = vpack.c.b16 %v2058, %v2057
        %v2064 = vpack.c.b16 %v2060, %v2059
        %vm2069 = vcmask 523264
        %v2071 = vsel %vm2069, %v2040, 0
        %2073 = vmatprep.subr.bf16.mxu0 0
        %2074 = vmatpush1.bf16.msra.mxu0 %v2061
        %2075 = vmatprep.subr.bf16.mxu0 0
        %2076 = vmatpush1.bf16.msra.mxu0 %v2062
        %2077 = vmatprep.subr.bf16.mxu0 0
        %2078 = vmatpush1.bf16.msra.mxu0 %v2063
        %2079 = vmatprep.subr.bf16.mxu0 0
        %2080 = vmatpush1.bf16.msra.mxu0 %v2064
        %2081 = vmatprep.subr.bf16.mxu0 0
        %2082 = vmatpush1.bf16.msra.mxu0 0
        %2083 = vmatprep.subr.bf16.mxu0 0
        %2084 = vmatpush1.bf16.msra.mxu0 0
        %2085 = vmatprep.subr.bf16.mxu0 0
        %2086 = vmatpush1.bf16.msra.mxu0 0
        %2087 = vmatprep.subr.bf16.mxu0 0
        %2088 = vmatpush1.bf16.msra.mxu0 0
        %2089 = vmatprep.subr.bf16.mxu0 0
        %2090 = vmatpush1.bf16.msra.mxu0 0
        %2091 = vmatprep.subr.bf16.mxu0 0
        %2092 = vmatpush1.bf16.msra.mxu0 0
        %2093 = vmatprep.subr.bf16.mxu0 0
        %2094 = vmatpush1.bf16.msra.mxu0 0
        %2095 = vmatprep.subr.bf16.mxu0 0
        %2096 = vmatpush1.bf16.msra.mxu0 0
        %2097 = vmatprep.subr.bf16.mxu0 0
        %2098 = vmatpush1.bf16.msra.mxu0 0
        %2099 = vmatprep.subr.bf16.mxu0 0
        %2100 = vmatpush1.bf16.msra.mxu0 0
        %2101 = vmatprep.subr.bf16.mxu0 0
        %2102 = vmatpush1.bf16.msra.mxu0 0
        %2103 = vmatprep.subr.bf16.mxu0 0
        %2104 = vmatpush1.bf16.msra.mxu0 0
        %2105 = vmatprep.mubr.bf16.mxu0 0
        %2106 = vmatmul.mubr.bf16.gmra.mrb[0].mxu0 %v2071
        %v2107 = vpop.f32.mrb[0].mxu0
        %v2108 = vadd.f32 %v2044, %v2107
        %v2109 = vpop.f32.mrb[0].mxu0
        %v2110 = vpop.f32.mrb[0].mxu0
        %v2111 = vadd.f32 %v2044, %v2110
        %v2112 = vpop.f32.mrb[0].mxu0
        %2113 = vdwg.mxu0
        %v2114 = vadd.f32 %v1914, %v2108
        %v2115 = vadd.f32 %v1915, %v2111
        %2116 = vst.msk [vmem:[#allocation8] sm:$0xff] %vm587, %v2114
        %2117 = vst.msk [vmem:[#allocation8 + $0x8] sm:$0xff] %vm587, %v2115
        %s2118 = sand.u32 %s312, 1
        %s2119 = scalar_lea.sflag [#allocation10], %s2118
        %s2120 = sand.u32 %s312, 1
        %s2121 = smul.addr %s2120, 16
        %s2122 = scalar_lea.vmem [#allocation9], %s2121
        // Predicated region
        $region73: #{tpu_custom_call.1} parent=55 // pred_check
          %p2123 = pneg %p294
        $region74: #{tpu_custom_call.1} parent=55 // pred_check_branch
          %2125 = sbr.rel (%p2123) target = $region76
        $region75: #{tpu_custom_call.1} parent=55 // pred_region
          %s2126 = smul.u32 2, %s34
          %s2128 = ssub.s32 256, 256
          %2129 = vsyncadd [#allocation4], %s2128
          %s2130 = smul.addr %s2126, 128
          %s2131 = scalar_lea.hbm %s9, %s2130
          %s2132 = sshll.u32 [#allocation8], 4
          %s2133 = int_to_ptr.vmem [resolvable:$true] %s2132
          %2138 = dma.vmem_to_hbm [thread:$0]  %s2133, 256, %s2131, [#allocation4], 128, 128, 8
        $region76: #{tpu_custom_call.1} parent=55 // pred_fallthru
          _
        // Predicated region
        $region77: #{tpu_custom_call.1} parent=55 // pred_check
          %p2139 = pneg %p322
        $region78: #{tpu_custom_call.1} parent=55 // pred_check_branch
          %2141 = sbr.rel (%p2139) target = $region80
        $region79: #{tpu_custom_call.1} parent=55 // pred_region
          %s2142 = smul.u32 2, %s34
          %s2144 = ssub.s32 256, 256
          %2145 = vsyncadd %s2119, %s2144
          %s2146 = smul.addr %s35, 2
          %s2147 = sadd.s32 %s2142, %s2146
          %s2148 = smul.addr %s2147, 128
          %s2149 = scalar_lea.hbm %s10, %s2148
          %s2150 = sshll.u32 %s2122, 4
          %s2151 = int_to_ptr.vmem [resolvable:$true] %s2150
          %2156 = dma.vmem_to_hbm [thread:$0]  %s2151, 256, %s2149, %s2119, 128, 128, 8
        $region80: #{tpu_custom_call.1} parent=55 // pred_fallthru
          _
        // Predicated region
        $region81: #{tpu_custom_call.1} parent=55 // pred_check
          %p2157 = pneg %p294
        $region82: #{tpu_custom_call.1} parent=55 // pred_check_branch
          %2159 = sbr.rel (%p2157) target = $region84
        $region83: #{tpu_custom_call.1} parent=55 // pred_region
          %2160 = dma.done [#allocation4], 256
        $region84: #{tpu_custom_call.1} parent=55 // pred_fallthru
          _
      $region56: #{tpu_custom_call.1} parent=5 // pred_fallthru
        _
      %p2161 = scmp.le.s32.totalorder 2, %s25
      // Predicated region
      $region85: #{tpu_custom_call.1} parent=5 // pred_check
        %p2162 = pneg %p2161
      $region86: #{tpu_custom_call.1} parent=5 // pred_check_branch
        %2164 = sbr.rel (%p2162) target = $region88
      $region87: #{tpu_custom_call.1} parent=5 // pred_region
        %s2165 = ssub.s32 %s25, 2
        // Predicated region
        $region89: #{tpu_custom_call.1} parent=87 // pred_check
          %p2166 = pneg %p328
        $region90: #{tpu_custom_call.1} parent=87 // pred_check_branch
          %2168 = sbr.rel (%p2166) target = $region92
        $region91: #{tpu_custom_call.1} parent=87 // pred_region
          %s2169 = sand.u32 %s313, 1
          %s2170 = scalar_lea.sflag [#allocation10], %s2169
          %s2171 = sand.u32 %s313, 1
          %s2172 = smul.addr %s2171, 16
          %s2173 = scalar_lea.vmem [#allocation9], %s2172
          %2174 = dma.done %s2170, 256
        $region92: #{tpu_custom_call.1} parent=87 // pred_fallthru
          _
      $region88: #{tpu_custom_call.1} parent=5 // pred_fallthru
        _
    $region6: #{tpu_custom_call.1} parent=1 // loop_footer
      %s29 = sadd.s32 1, %s25
    $region7: #{tpu_custom_call.1} parent=1 // loop_footer_branch
      %24 = sbr.rel target = $region3
    $region8: #{tpu_custom_call.1} parent=1 // loop_exit
      _
    %2175 = vsyncpa [#allocation3], 1
    %s2176 = scalar_lea.sflag [#allocation3], 1
    %2177 = vsyncpa %s2176, 1
    %2178 = vsyncpa [#allocation6], 1
    %s2179 = scalar_lea.sflag [#allocation6], 1
    %2180 = vsyncpa %s2179, 1
    %2181 = vsyncpa [#allocation4], 1
    %s2182 = scalar_lea.sflag [#allocation4], 1
    %2183 = vsyncpa %s2182, 1
    %2184 = vsyncpa [#allocation10], 1
    %s2185 = scalar_lea.sflag [#allocation10], 1
    %2186 = vsyncpa %s2185, 1

</llo_original>
